<compile_context>
chip_gen: v7x
topology: tpu7x:2x2x1
jax: 0.10.0
libtpu: 0.0.40
codegen_flags: <defaults>
</compile_context>

<pallas_src>
import functools

import jax
import jax.numpy as jnp
from jax.experimental import pallas as pl
from jax.experimental.pallas import tpu as pltpu

LOG_SIG_MAX = 2.0
LOG_SIG_MIN = -5.0
MEAN_MAX = 9.0
MEAN_MIN = -9.0


def _round_up(x, m):
    return ((x + m - 1) // m) * m


def _cdiv(a, b):
    return -(-a // b)


def _silu(x):
    return x * jax.nn.sigmoid(x)


def _d2rl_actor_kernel(num_layers, hidden_dim, slab, action_dim, *refs):
    """Fused D2RL actor forward for one batch tile.

    refs (all VMEM):
      state_ref                  (TB, input_dim)            f32
      wsall_ref                  (input_dim, L*slab)        bf16  [w0 | ws_1 | ... | ws_{L-1}]
      ball_ref                   (1, L*slab)                f32   [b0 | b_1 | ... | b_{L-1}]
      wx_ref_1 .. wx_ref_{L-1}   (H, H)                     bf16
      wh_ref                     (H, head_w)                bf16  [wm | ws] packed in one 128-lane slab
      bh_ref                     (1, head_w)                f32
      out_ref                    (TB, head_w)               f32   [mean | std]
    """
    it = iter(refs)
    state_ref = next(it)
    wsall_ref = next(it)
    ball_ref = next(it)
    wx_refs = [next(it) for _ in range(num_layers - 1)]
    wh_ref = next(it)
    bh_ref = next(it)
    out_ref = next(it)

    s = state_ref[...].astype(jnp.bfloat16)

    # Single fused K=input_dim matmul: layer-0 pre-activation (cols [0:H)) and
    # the state projection of every D2RL layer (128-aligned slabs). Biases are
    # packed into the same slabs, so this addition covers b0 and all b_i.
    sp = jnp.dot(s, wsall_ref[...], preferred_element_type=jnp.float32) + ball_ref[...]

    # first layer + SiLU (f32 elementwise)
    x = _silu(sp[:, :hidden_dim])

    # D2RL layers: cat([x, state]) @ W == x @ Wx + s_proj (already in sp)
    for i in range(num_layers - 1):
        lo = (i + 1) * slab  # 128-lane-aligned slab start -> zero-cost slice
        z = (jnp.dot(x.astype(jnp.bfloat16), wx_refs[i][...],
                     preferred_element_type=jnp.float32)
             + sp[:, lo:lo + hidden_dim])
        x = _silu(z)

    # fused mean|log_std head: single matmul into one 128-lane block, per-column
    # clip/exp selection via a column mask, one full-width lane-dense store.
    head = (jnp.dot(x.astype(jnp.bfloat16), wh_ref[...],
                    preferred_element_type=jnp.float32)
            + bh_ref[...])
    col = jax.lax.broadcasted_iota(jnp.int32, head.shape, 1)
    mean_part = jnp.clip(head, MEAN_MIN, MEAN_MAX)
    std_part = jnp.exp(jnp.clip(head, LOG_SIG_MIN, LOG_SIG_MAX))
    out_ref[...] = jnp.where(col < action_dim, mean_part, std_part)


def init_d2rl_actor_params(key, input_dim, action_dim, num_layers=2,
                           hidden_dim=256, init_w=0.001):
    """Deterministic synthetic init (mirrors nn.Linear default + uniform heads).

    Weights are stored already transposed to (in, out), in f32."""
    params = {}

    def linear_init(k, fan_in, fan_out):
        kw, kb = jax.random.split(k)
        bound = 1.0 / jnp.sqrt(jnp.float32(fan_in))
        w = jax.random.uniform(kw, (fan_in, fan_out), jnp.float32, -bound, bound)
        b = jax.random.uniform(kb, (1, fan_out), jnp.float32, -bound, bound)
        return w, b

    keys = jax.random.split(key, num_layers + 2)

    # fc_layers[0]: input_dim -> hidden_dim
    params["w0"], params["b0"] = linear_init(keys[0], input_dim, hidden_dim)

    # fc_layers[1:]: (hidden_dim + input_dim) -> hidden_dim; split along input dim
    aux_dim = input_dim + hidden_dim
    params["d2rl"] = []
    for i in range(1, num_layers):
        w_full, b = linear_init(keys[i], aux_dim, hidden_dim)
        # cat order is [x, state]: first hidden_dim rows multiply x, rest multiply state
        params["d2rl"].append((w_full[:hidden_dim, :], w_full[hidden_dim:, :], b))

    # heads: uniform(-init_w, init_w)
    km = jax.random.split(keys[num_layers], 2)
    params["wm"] = jax.random.uniform(km[0], (hidden_dim, action_dim), jnp.float32,
                                      -init_w, init_w)
    params["bm"] = jax.random.uniform(km[1], (1, action_dim), jnp.float32,
                                      -init_w, init_w)
    ks = jax.random.split(keys[num_layers + 1], 2)
    params["ws"] = jax.random.uniform(ks[0], (hidden_dim, action_dim), jnp.float32,
                                      -init_w, init_w)
    params["bs"] = jax.random.uniform(ks[1], (1, action_dim), jnp.float32,
                                      -init_w, init_w)
    return params


def pack_d2rl_actor_params(params, num_layers=2):
    """One-time packing/casting of parameters for the kernel.

    Call once and reuse the result across forward calls — all concatenation,
    padding and bf16 casting lives here, NOT in the per-call forward path."""
    input_dim, hidden_dim = params["w0"].shape
    action_dim = params["wm"].shape[1]
    slab = _round_up(hidden_dim, 128)          # 128-lane-aligned s_proj slabs

    # fused state-side matrix [w0 | ws_1 | ... | ws_{L-1}] and matching biases
    wsall = jnp.zeros((input_dim, num_layers * slab), jnp.float32)
    ball = jnp.zeros((1, num_layers * slab), jnp.float32)
    wsall = wsall.at[:, :hidden_dim].set(params["w0"])
    ball = ball.at[:, :hidden_dim].set(params["b0"])
    wx_list = []
    for i, (wx, ws_, b) in enumerate(params["d2rl"]):
        lo = (i + 1) * slab
        wsall = wsall.at[:, lo:lo + hidden_dim].set(ws_)
        ball = ball.at[:, lo:lo + hidden_dim].set(b)
        wx_list.append(wx.astype(jnp.bfloat16))

    # fused mean|log_std head packed into a single 128-lane-rounded block:
    # cols [0:a) = mean, cols [a:2a) = log_std, rest = padding
    head_w = _round_up(2 * action_dim, 128)
    wh = jnp.zeros((hidden_dim, head_w), jnp.float32)
    wh = wh.at[:, :action_dim].set(params["wm"])
    wh = wh.at[:, action_dim:2 * action_dim].set(params["ws"])
    bh = jnp.zeros((1, head_w), jnp.float32)
    bh = bh.at[:, :action_dim].set(params["bm"])
    bh = bh.at[:, action_dim:2 * action_dim].set(params["bs"])

    return {
        "wsall": wsall.astype(jnp.bfloat16),
        "ball": ball,
        "wx": tuple(wx_list),
        "wh": wh.astype(jnp.bfloat16),
        "bh": bh,
        "num_layers": num_layers,
        "hidden_dim": hidden_dim,
        "slab": slab,
        "input_dim": input_dim,
        "action_dim": action_dim,
        "head_w": head_w,
    }


def _choose_batch_tile(batch, batch_tile):
    """Pick a 16-aligned tile >= 16, with total padding < 1 tile and >= 2 tiles
    when the batch allows (so ("parallel",) can shard across v7x's 2 TCs)."""
    b_min = _round_up(max(batch, 16), 16)
    tb_cap = max(16, min(_round_up(batch_tile, 16), b_min))
    n_tiles = _cdiv(b_min, tb_cap)
    if b_min >= 32:
        n_tiles = max(n_tiles, 2)
    tb = _round_up(_cdiv(b_min, n_tiles), 16)
    n_tiles = _cdiv(b_min, tb)
    return tb, n_tiles, tb * n_tiles


def d2rl_actor_forward(packed, state, batch_tile=1024):
    """Run the fused Pallas kernel.

    packed: output of pack_d2rl_actor_params (reused across calls).
    state:  [B, input_dim] f32. Returns (mean, std), each [B, action_dim]."""
    batch, input_dim = state.shape
    assert input_dim == packed["input_dim"]
    num_layers = packed["num_layers"]
    hidden_dim = packed["hidden_dim"]
    slab = packed["slab"]
    action_dim = packed["action_dim"]
    head_w = packed["head_w"]

    tb, n_tiles, b_pad = _choose_batch_tile(batch, batch_tile)

    state = state.astype(jnp.float32)
    if b_pad != batch:
        state = jnp.pad(state, ((0, b_pad - batch), (0, 0)))

    consts = [packed["wsall"], packed["ball"], *packed["wx"],
              packed["wh"], packed["bh"]]

    kernel = functools.partial(_d2rl_actor_kernel, num_layers, hidden_dim,
                               slab, action_dim)

    def build(single_buffer_weights):
        # Constant-index weights never get re-DMA'd; Buffered(1) drops their
        # unnecessary double buffer (halves their VMEM footprint).
        extra = ({"pipeline_mode": pl.Buffered(1)} if single_buffer_weights else {})
        const_specs = [pl.BlockSpec(a.shape, lambda i: (0, 0), **extra)
                       for a in consts]
        return pl.pallas_call(
            kernel,
            out_shape=jax.ShapeDtypeStruct((b_pad, head_w), jnp.float32),
            grid=(n_tiles,),
            in_specs=[pl.BlockSpec((tb, input_dim), lambda i: (i, 0))] + const_specs,
            out_specs=pl.BlockSpec((tb, head_w), lambda i: (i, 0)),
            compiler_params=pltpu.CompilerParams(
                dimension_semantics=("parallel",),
                vmem_limit_bytes=32 * 1024 * 1024,
            ),
        )

    try:
        out = build(True)(state, *consts)
    except Exception:
        # Fall back to default double-buffered weight specs if this JAX build
        # rejects single-buffered pipeline_mode.
        out = build(False)(state, *consts)

    mean = out[:batch, :action_dim]
    std = out[:batch, action_dim:2 * action_dim]
    return mean, std


def d2rl_actor_reference(params, state):
    """Pure-JAX f32 reference for correctness checking."""
    x = _silu(state @ params["w0"] + params["b0"])
    for wx, ws_, b in params["d2rl"]:
        x = _silu(x @ wx + state @ ws_ + b)
    mean = jnp.clip(x @ params["wm"] + params["bm"], MEAN_MIN, MEAN_MAX)
    log_std = jnp.clip(x @ params["ws"] + params["bs"], LOG_SIG_MIN, LOG_SIG_MAX)
    return mean, jnp.exp(log_std)


if __name__ == "__main__":
    input_dim = 16
    hidden_dim = 128
    action_dim = 4
    num_layers = 3

    key = jax.random.PRNGKey(0)
    k_params, k_state1, k_state2 = jax.random.split(key, 3)

    params = init_d2rl_actor_params(k_params, input_dim, action_dim,
                                    num_layers=num_layers, hidden_dim=hidden_dim,
                                    init_w=0.001)
    packed = pack_d2rl_actor_params(params, num_layers=num_layers)

    # small batch (single tile)
    batch = 4
    state = jax.random.normal(k_state1, (batch, input_dim), jnp.float32)
    mean, std = d2rl_actor_forward(packed, state)
    jax.block_until_ready((mean, std))
    mean_ref, std_ref = d2rl_actor_reference(params, state)
    assert mean.shape == (batch, action_dim) and std.shape == (batch, action_dim)
    # bf16 matmuls with f32 accumulation -> loosened tolerance vs f32 reference
    assert jnp.allclose(mean, mean_ref, atol=2e-3, rtol=2e-2)
    assert jnp.allclose(std, std_ref, atol=2e-3, rtol=2e-2)

    # non-multiple-of-tile batch (multi-tile + padding path)
    batch2 = 40
    state2 = jax.random.normal(k_state2, (batch2, input_dim), jnp.float32)
    mean2, std2 = d2rl_actor_forward(packed, state2)
    jax.block_until_ready((mean2, std2))
    mean2_ref, std2_ref = d2rl_actor_reference(params, state2)
    assert mean2.shape == (batch2, action_dim) and std2.shape == (batch2, action_dim)
    assert jnp.allclose(mean2, mean2_ref, atol=2e-3, rtol=2e-2)
    assert jnp.allclose(std2, std2_ref, atol=2e-3, rtol=2e-2)

    print("KERNEL_OK")
</pallas_src>

<mosaic_0001>
module attributes {stable_mosaic.version = 11 : i64} {
  func.func @_d2rl_actor_kernel(%arg0: i32, %arg1: memref<16x16xf32, #tpu.memory_space<vmem>>, %arg2: memref<16x384xbf16, #tpu.memory_space<vmem>>, %arg3: memref<1x384xf32, #tpu.memory_space<vmem>>, %arg4: memref<128x128xbf16, #tpu.memory_space<vmem>>, %arg5: memref<128x128xbf16, #tpu.memory_space<vmem>>, %arg6: memref<128x128xbf16, #tpu.memory_space<vmem>>, %arg7: memref<1x128xf32, #tpu.memory_space<vmem>>, %arg8: memref<16x128xf32, #tpu.memory_space<vmem>>) attributes {dimension_semantics = [#tpu.dimension_semantics<parallel>], iteration_bounds = array<i64: 1>, scalar_prefetch = 0 : i64, scratch_operands = 0 : i64, tpu.core_type = #tpu.core_type<tc>, window_params = [{transform_indices = @transform_0, window_bounds = array<i64: 16, 16>}, {pipeline_mode = #tpu.pipeline_mode<synchronous>, transform_indices = @transform_1, window_bounds = array<i64: 16, 384>}, {pipeline_mode = #tpu.pipeline_mode<synchronous>, transform_indices = @transform_2, window_bounds = array<i64: 1, 384>}, {pipeline_mode = #tpu.pipeline_mode<synchronous>, transform_indices = @transform_3, window_bounds = array<i64: 128, 128>}, {pipeline_mode = #tpu.pipeline_mode<synchronous>, transform_indices = @transform_4, window_bounds = array<i64: 128, 128>}, {pipeline_mode = #tpu.pipeline_mode<synchronous>, transform_indices = @transform_5, window_bounds = array<i64: 128, 128>}, {pipeline_mode = #tpu.pipeline_mode<synchronous>, transform_indices = @transform_6, window_bounds = array<i64: 1, 128>}, {transform_indices = @transform_7, window_bounds = array<i64: 16, 128>}]} {
    %c0 = arith.constant 0 : index
    %c0_0 = arith.constant 0 : index
    %0 = vector.load %arg1[%c0, %c0_0] : memref<16x16xf32, #tpu.memory_space<vmem>>, vector<16x16xf32>
    %1 = arith.truncf %0 : vector<16x16xf32> to vector<16x16xbf16>
    %c0_1 = arith.constant 0 : index
    %c0_2 = arith.constant 0 : index
    %2 = vector.load %arg2[%c0_1, %c0_2] : memref<16x384xbf16, #tpu.memory_space<vmem>>, vector<16x384xbf16>
    %cst = arith.constant dense<0.000000e+00> : vector<16x384xf32>
    %3 = tpu.matmul %1, %2, %cst {dimension_numbers = #tpu.dot_dimension_numbers<[1], [0], [0], [1], [0, 0, 1, 1], [], []>} : vector<16x16xbf16>, vector<16x384xbf16>, vector<16x384xf32> -> vector<16x384xf32>
    %c0_3 = arith.constant 0 : index
    %c0_4 = arith.constant 0 : index
    %4 = vector.load %arg3[%c0_3, %c0_4] : memref<1x384xf32, #tpu.memory_space<vmem>>, vector<1x384xf32>
    %5 = vector.broadcast %4 : vector<1x384xf32> to vector<16x384xf32>
    %6 = arith.addf %3, %5 : vector<16x384xf32>
    %7 = vector.extract_strided_slice %6 {offsets = [0, 0], sizes = [16, 128], strides = [1, 1]} : vector<16x384xf32> to vector<16x128xf32>
    %8 = arith.negf %7 : vector<16x128xf32>
    %9 = math.exp %8 : vector<16x128xf32>
    %cst_5 = arith.constant 1.000000e+00 : f32
    %10 = vector.broadcast %cst_5 : f32 to vector<16x128xf32>
    %11 = arith.addf %10, %9 : vector<16x128xf32>
    %12 = arith.divf %10, %11 : vector<16x128xf32>
    %13 = arith.mulf %7, %12 : vector<16x128xf32>
    %14 = arith.truncf %13 : vector<16x128xf32> to vector<16x128xbf16>
    %c0_6 = arith.constant 0 : index
    %c0_7 = arith.constant 0 : index
    %15 = vector.load %arg4[%c0_6, %c0_7] : memref<128x128xbf16, #tpu.memory_space<vmem>>, vector<128x128xbf16>
    %cst_8 = arith.constant dense<0.000000e+00> : vector<16x128xf32>
    %16 = tpu.matmul %14, %15, %cst_8 {dimension_numbers = #tpu.dot_dimension_numbers<[1], [0], [0], [1], [0, 0, 1, 1], [], []>} : vector<16x128xbf16>, vector<128x128xbf16>, vector<16x128xf32> -> vector<16x128xf32>
    %17 = vector.extract_strided_slice %6 {offsets = [0, 128], sizes = [16, 128], strides = [1, 1]} : vector<16x384xf32> to vector<16x128xf32>
    %18 = arith.addf %16, %17 : vector<16x128xf32>
    %19 = arith.negf %18 : vector<16x128xf32>
    %20 = math.exp %19 : vector<16x128xf32>
    %cst_9 = arith.constant 1.000000e+00 : f32
    %21 = vector.broadcast %cst_9 : f32 to vector<16x128xf32>
    %22 = arith.addf %21, %20 : vector<16x128xf32>
    %23 = arith.divf %21, %22 : vector<16x128xf32>
    %24 = arith.mulf %18, %23 : vector<16x128xf32>
    %25 = arith.truncf %24 : vector<16x128xf32> to vector<16x128xbf16>
    %c0_10 = arith.constant 0 : index
    %c0_11 = arith.constant 0 : index
    %26 = vector.load %arg5[%c0_10, %c0_11] : memref<128x128xbf16, #tpu.memory_space<vmem>>, vector<128x128xbf16>
    %cst_12 = arith.constant dense<0.000000e+00> : vector<16x128xf32>
    %27 = tpu.matmul %25, %26, %cst_12 {dimension_numbers = #tpu.dot_dimension_numbers<[1], [0], [0], [1], [0, 0, 1, 1], [], []>} : vector<16x128xbf16>, vector<128x128xbf16>, vector<16x128xf32> -> vector<16x128xf32>
    %28 = vector.extract_strided_slice %6 {offsets = [0, 256], sizes = [16, 128], strides = [1, 1]} : vector<16x384xf32> to vector<16x128xf32>
    %29 = arith.addf %27, %28 : vector<16x128xf32>
    %30 = arith.negf %29 : vector<16x128xf32>
    %31 = math.exp %30 : vector<16x128xf32>
    %cst_13 = arith.constant 1.000000e+00 : f32
    %32 = vector.broadcast %cst_13 : f32 to vector<16x128xf32>
    %33 = arith.addf %32, %31 : vector<16x128xf32>
    %34 = arith.divf %32, %33 : vector<16x128xf32>
    %35 = arith.mulf %29, %34 : vector<16x128xf32>
    %36 = arith.truncf %35 : vector<16x128xf32> to vector<16x128xbf16>
    %c0_14 = arith.constant 0 : index
    %c0_15 = arith.constant 0 : index
    %37 = vector.load %arg6[%c0_14, %c0_15] : memref<128x128xbf16, #tpu.memory_space<vmem>>, vector<128x128xbf16>
    %cst_16 = arith.constant dense<0.000000e+00> : vector<16x128xf32>
    %38 = tpu.matmul %36, %37, %cst_16 {dimension_numbers = #tpu.dot_dimension_numbers<[1], [0], [0], [1], [0, 0, 1, 1], [], []>} : vector<16x128xbf16>, vector<128x128xbf16>, vector<16x128xf32> -> vector<16x128xf32>
    %c0_17 = arith.constant 0 : index
    %c0_18 = arith.constant 0 : index
    %39 = vector.load %arg7[%c0_17, %c0_18] : memref<1x128xf32, #tpu.memory_space<vmem>>, vector<1x128xf32>
    %40 = vector.broadcast %39 : vector<1x128xf32> to vector<16x128xf32>
    %41 = arith.addf %38, %40 : vector<16x128xf32>
    %42 = tpu.iota {dimensions = array<i32: 1>} : vector<16x128xi32>
    %cst_19 = arith.constant -9.000000e+00 : f32
    %cst_20 = arith.constant 9.000000e+00 : f32
    %43 = vector.broadcast %cst_19 : f32 to vector<16x128xf32>
    %44 = arith.maximumf %43, %41 : vector<16x128xf32>
    %45 = vector.broadcast %cst_20 : f32 to vector<16x128xf32>
    %46 = arith.minimumf %45, %44 : vector<16x128xf32>
    %cst_21 = arith.constant -5.000000e+00 : f32
    %cst_22 = arith.constant 2.000000e+00 : f32
    %47 = vector.broadcast %cst_21 : f32 to vector<16x128xf32>
    %48 = arith.maximumf %47, %41 : vector<16x128xf32>
    %49 = vector.broadcast %cst_22 : f32 to vector<16x128xf32>
    %50 = arith.minimumf %49, %48 : vector<16x128xf32>
    %51 = math.exp %50 : vector<16x128xf32>
    %c4_i32 = arith.constant 4 : i32
    %52 = vector.broadcast %c4_i32 : i32 to vector<16x128xi32>
    %53 = arith.cmpi slt, %42, %52 : vector<16x128xi32>
    %54 = arith.select %53, %46, %51 : vector<16x128xi1>, vector<16x128xf32>
    %c0_23 = arith.constant 0 : index
    %c0_24 = arith.constant 0 : index
    %55 = vector.load %arg8[%c0_23, %c0_24] : memref<16x128xf32, #tpu.memory_space<vmem>>, vector<16x128xf32>
    tpu.vector_store %arg8[%c0_23, %c0_24], %54 {strides = array<i32>} : memref<16x128xf32, #tpu.memory_space<vmem>>, vector<16x128xf32>,
    return
  }
  func.func @transform_0(%arg0: i32) -> (i32, i32) {
    %c0_i32 = arith.constant 0 : i32
    %c0_i32_0 = arith.constant 0 : i32
    return %arg0, %c0_i32 : i32, i32
  }
  func.func @transform_1(%arg0: i32) -> (i32, i32) {
    %c0_i32 = arith.constant 0 : i32
    %c0_i32_0 = arith.constant 0 : i32
    %c0_i32_1 = arith.constant 0 : i32
    return %c0_i32, %c0_i32_0 : i32, i32
  }
  func.func @transform_2(%arg0: i32) -> (i32, i32) {
    %c0_i32 = arith.constant 0 : i32
    %c0_i32_0 = arith.constant 0 : i32
    %c0_i32_1 = arith.constant 0 : i32
    return %c0_i32, %c0_i32_0 : i32, i32
  }
  func.func @transform_3(%arg0: i32) -> (i32, i32) {
    %c0_i32 = arith.constant 0 : i32
    %c0_i32_0 = arith.constant 0 : i32
    %c0_i32_1 = arith.constant 0 : i32
    return %c0_i32, %c0_i32_0 : i32, i32
  }
  func.func @transform_4(%arg0: i32) -> (i32, i32) {
    %c0_i32 = arith.constant 0 : i32
    %c0_i32_0 = arith.constant 0 : i32
    %c0_i32_1 = arith.constant 0 : i32
    return %c0_i32, %c0_i32_0 : i32, i32
  }
  func.func @transform_5(%arg0: i32) -> (i32, i32) {
    %c0_i32 = arith.constant 0 : i32
    %c0_i32_0 = arith.constant 0 : i32
    %c0_i32_1 = arith.constant 0 : i32
    return %c0_i32, %c0_i32_0 : i32, i32
  }
  func.func @transform_6(%arg0: i32) -> (i32, i32) {
    %c0_i32 = arith.constant 0 : i32
    %c0_i32_0 = arith.constant 0 : i32
    %c0_i32_1 = arith.constant 0 : i32
    return %c0_i32, %c0_i32_0 : i32, i32
  }
  func.func @transform_7(%arg0: i32) -> (i32, i32) {
    %c0_i32 = arith.constant 0 : i32
    %c0_i32_0 = arith.constant 0 : i32
    return %arg0, %c0_i32 : i32, i32
  }
}

module attributes {stable_mosaic.version = 11 : i64} {
  func.func @_d2rl_actor_kernel(%arg0: i32, %arg1: memref<16x16xf32, #tpu.memory_space<vmem>>, %arg2: memref<16x384xbf16, #tpu.memory_space<vmem>>, %arg3: memref<1x384xf32, #tpu.memory_space<vmem>>, %arg4: memref<128x128xbf16, #tpu.memory_space<vmem>>, %arg5: memref<128x128xbf16, #tpu.memory_space<vmem>>, %arg6: memref<128x128xbf16, #tpu.memory_space<vmem>>, %arg7: memref<1x128xf32, #tpu.memory_space<vmem>>, %arg8: memref<16x128xf32, #tpu.memory_space<vmem>>) attributes {dimension_semantics = [#tpu.dimension_semantics<parallel>], iteration_bounds = array<i64: 1>, scalar_prefetch = 0 : i64, scratch_operands = 0 : i64, tpu.core_type = #tpu.core_type<tc>, window_params = [{transform_indices = @transform_0, window_bounds = array<i64: 16, 16>}, {pipeline_mode = #tpu.pipeline_mode<synchronous>, transform_indices = @transform_1, window_bounds = array<i64: 16, 384>}, {pipeline_mode = #tpu.pipeline_mode<synchronous>, transform_indices = @transform_2, window_bounds = array<i64: 1, 384>}, {pipeline_mode = #tpu.pipeline_mode<synchronous>, transform_indices = @transform_3, window_bounds = array<i64: 128, 128>}, {pipeline_mode = #tpu.pipeline_mode<synchronous>, transform_indices = @transform_4, window_bounds = array<i64: 128, 128>}, {pipeline_mode = #tpu.pipeline_mode<synchronous>, transform_indices = @transform_5, window_bounds = array<i64: 128, 128>}, {pipeline_mode = #tpu.pipeline_mode<synchronous>, transform_indices = @transform_6, window_bounds = array<i64: 1, 128>}, {transform_indices = @transform_7, window_bounds = array<i64: 16, 128>}]} {
    %c0 = arith.constant 0 : index
    %c0_0 = arith.constant 0 : index
    %0 = vector.load %arg1[%c0, %c0_0] : memref<16x16xf32, #tpu.memory_space<vmem>>, vector<16x16xf32>
    %1 = arith.truncf %0 : vector<16x16xf32> to vector<16x16xbf16>
    %c0_1 = arith.constant 0 : index
    %c0_2 = arith.constant 0 : index
    %2 = vector.load %arg2[%c0_1, %c0_2] : memref<16x384xbf16, #tpu.memory_space<vmem>>, vector<16x384xbf16>
    %cst = arith.constant dense<0.000000e+00> : vector<16x384xf32>
    %3 = tpu.matmul %1, %2, %cst {dimension_numbers = #tpu.dot_dimension_numbers<[1], [0], [0], [1], [0, 0, 1, 1], [], []>} : vector<16x16xbf16>, vector<16x384xbf16>, vector<16x384xf32> -> vector<16x384xf32>
    %c0_3 = arith.constant 0 : index
    %c0_4 = arith.constant 0 : index
    %4 = vector.load %arg3[%c0_3, %c0_4] : memref<1x384xf32, #tpu.memory_space<vmem>>, vector<1x384xf32>
    %5 = vector.broadcast %4 : vector<1x384xf32> to vector<16x384xf32>
    %6 = arith.addf %3, %5 : vector<16x384xf32>
    %7 = vector.extract_strided_slice %6 {offsets = [0, 0], sizes = [16, 128], strides = [1, 1]} : vector<16x384xf32> to vector<16x128xf32>
    %8 = arith.negf %7 : vector<16x128xf32>
    %9 = math.exp %8 : vector<16x128xf32>
    %cst_5 = arith.constant 1.000000e+00 : f32
    %10 = vector.broadcast %cst_5 : f32 to vector<16x128xf32>
    %11 = arith.addf %10, %9 : vector<16x128xf32>
    %12 = arith.divf %10, %11 : vector<16x128xf32>
    %13 = arith.mulf %7, %12 : vector<16x128xf32>
    %14 = arith.truncf %13 : vector<16x128xf32> to vector<16x128xbf16>
    %c0_6 = arith.constant 0 : index
    %c0_7 = arith.constant 0 : index
    %15 = vector.load %arg4[%c0_6, %c0_7] : memref<128x128xbf16, #tpu.memory_space<vmem>>, vector<128x128xbf16>
    %cst_8 = arith.constant dense<0.000000e+00> : vector<16x128xf32>
    %16 = tpu.matmul %14, %15, %cst_8 {dimension_numbers = #tpu.dot_dimension_numbers<[1], [0], [0], [1], [0, 0, 1, 1], [], []>} : vector<16x128xbf16>, vector<128x128xbf16>, vector<16x128xf32> -> vector<16x128xf32>
    %17 = vector.extract_strided_slice %6 {offsets = [0, 128], sizes = [16, 128], strides = [1, 1]} : vector<16x384xf32> to vector<16x128xf32>
    %18 = arith.addf %16, %17 : vector<16x128xf32>
    %19 = arith.negf %18 : vector<16x128xf32>
    %20 = math.exp %19 : vector<16x128xf32>
    %cst_9 = arith.constant 1.000000e+00 : f32
    %21 = vector.broadcast %cst_9 : f32 to vector<16x128xf32>
    %22 = arith.addf %21, %20 : vector<16x128xf32>
    %23 = arith.divf %21, %22 : vector<16x128xf32>
    %24 = arith.mulf %18, %23 : vector<16x128xf32>
    %25 = arith.truncf %24 : vector<16x128xf32> to vector<16x128xbf16>
    %c0_10 = arith.constant 0 : index
    %c0_11 = arith.constant 0 : index
    %26 = vector.load %arg5[%c0_10, %c0_11] : memref<128x128xbf16, #tpu.memory_space<vmem>>, vector<128x128xbf16>
    %cst_12 = arith.constant dense<0.000000e+00> : vector<16x128xf32>
    %27 = tpu.matmul %25, %26, %cst_12 {dimension_numbers = #tpu.dot_dimension_numbers<[1], [0], [0], [1], [0, 0, 1, 1], [], []>} : vector<16x128xbf16>, vector<128x128xbf16>, vector<16x128xf32> -> vector<16x128xf32>
    %28 = vector.extract_strided_slice %6 {offsets = [0, 256], sizes = [16, 128], strides = [1, 1]} : vector<16x384xf32> to vector<16x128xf32>
    %29 = arith.addf %27, %28 : vector<16x128xf32>
    %30 = arith.negf %29 : vector<16x128xf32>
    %31 = math.exp %30 : vector<16x128xf32>
    %cst_13 = arith.constant 1.000000e+00 : f32
    %32 = vector.broadcast %cst_13 : f32 to vector<16x128xf32>
    %33 = arith.addf %32, %31 : vector<16x128xf32>
    %34 = arith.divf %32, %33 : vector<16x128xf32>
    %35 = arith.mulf %29, %34 : vector<16x128xf32>
    %36 = arith.truncf %35 : vector<16x128xf32> to vector<16x128xbf16>
    %c0_14 = arith.constant 0 : index
    %c0_15 = arith.constant 0 : index
    %37 = vector.load %arg6[%c0_14, %c0_15] : memref<128x128xbf16, #tpu.memory_space<vmem>>, vector<128x128xbf16>
    %cst_16 = arith.constant dense<0.000000e+00> : vector<16x128xf32>
    %38 = tpu.matmul %36, %37, %cst_16 {dimension_numbers = #tpu.dot_dimension_numbers<[1], [0], [0], [1], [0, 0, 1, 1], [], []>} : vector<16x128xbf16>, vector<128x128xbf16>, vector<16x128xf32> -> vector<16x128xf32>
    %c0_17 = arith.constant 0 : index
    %c0_18 = arith.constant 0 : index
    %39 = vector.load %arg7[%c0_17, %c0_18] : memref<1x128xf32, #tpu.memory_space<vmem>>, vector<1x128xf32>
    %40 = vector.broadcast %39 : vector<1x128xf32> to vector<16x128xf32>
    %41 = arith.addf %38, %40 : vector<16x128xf32>
    %42 = tpu.iota {dimensions = array<i32: 1>} : vector<16x128xi32>
    %cst_19 = arith.constant -9.000000e+00 : f32
    %cst_20 = arith.constant 9.000000e+00 : f32
    %43 = vector.broadcast %cst_19 : f32 to vector<16x128xf32>
    %44 = arith.maximumf %43, %41 : vector<16x128xf32>
    %45 = vector.broadcast %cst_20 : f32 to vector<16x128xf32>
    %46 = arith.minimumf %45, %44 : vector<16x128xf32>
    %cst_21 = arith.constant -5.000000e+00 : f32
    %cst_22 = arith.constant 2.000000e+00 : f32
    %47 = vector.broadcast %cst_21 : f32 to vector<16x128xf32>
    %48 = arith.maximumf %47, %41 : vector<16x128xf32>
    %49 = vector.broadcast %cst_22 : f32 to vector<16x128xf32>
    %50 = arith.minimumf %49, %48 : vector<16x128xf32>
    %51 = math.exp %50 : vector<16x128xf32>
    %c4_i32 = arith.constant 4 : i32
    %52 = vector.broadcast %c4_i32 : i32 to vector<16x128xi32>
    %53 = arith.cmpi slt, %42, %52 : vector<16x128xi32>
    %54 = arith.select %53, %46, %51 : vector<16x128xi1>, vector<16x128xf32>
    %c0_23 = arith.constant 0 : index
    %c0_24 = arith.constant 0 : index
    %55 = vector.load %arg8[%c0_23, %c0_24] : memref<16x128xf32, #tpu.memory_space<vmem>>, vector<16x128xf32>
    tpu.vector_store %arg8[%c0_23, %c0_24], %54 {strides = array<i32>} : memref<16x128xf32, #tpu.memory_space<vmem>>, vector<16x128xf32>,
    return
  }
  func.func @transform_0(%arg0: i32) -> (i32, i32) {
    %c0_i32 = arith.constant 0 : i32
    %c0_i32_0 = arith.constant 0 : i32
    return %arg0, %c0_i32 : i32, i32
  }
  func.func @transform_1(%arg0: i32) -> (i32, i32) {
    %c0_i32 = arith.constant 0 : i32
    %c0_i32_0 = arith.constant 0 : i32
    %c0_i32_1 = arith.constant 0 : i32
    return %c0_i32, %c0_i32_0 : i32, i32
  }
  func.func @transform_2(%arg0: i32) -> (i32, i32) {
    %c0_i32 = arith.constant 0 : i32
    %c0_i32_0 = arith.constant 0 : i32
    %c0_i32_1 = arith.constant 0 : i32
    return %c0_i32, %c0_i32_0 : i32, i32
  }
  func.func @transform_3(%arg0: i32) -> (i32, i32) {
    %c0_i32 = arith.constant 0 : i32
    %c0_i32_0 = arith.constant 0 : i32
    %c0_i32_1 = arith.constant 0 : i32
    return %c0_i32, %c0_i32_0 : i32, i32
  }
  func.func @transform_4(%arg0: i32) -> (i32, i32) {
    %c0_i32 = arith.constant 0 : i32
    %c0_i32_0 = arith.constant 0 : i32
    %c0_i32_1 = arith.constant 0 : i32
    return %c0_i32, %c0_i32_0 : i32, i32
  }
  func.func @transform_5(%arg0: i32) -> (i32, i32) {
    %c0_i32 = arith.constant 0 : i32
    %c0_i32_0 = arith.constant 0 : i32
    %c0_i32_1 = arith.constant 0 : i32
    return %c0_i32, %c0_i32_0 : i32, i32
  }
  func.func @transform_6(%arg0: i32) -> (i32, i32) {
    %c0_i32 = arith.constant 0 : i32
    %c0_i32_0 = arith.constant 0 : i32
    %c0_i32_1 = arith.constant 0 : i32
    return %c0_i32, %c0_i32_0 : i32, i32
  }
  func.func @transform_7(%arg0: i32) -> (i32, i32) {
    %c0_i32 = arith.constant 0 : i32
    %c0_i32_0 = arith.constant 0 : i32
    return %arg0, %c0_i32 : i32, i32
  }
}

</mosaic_0001>

<llo_original>
// kernel: tpu_custom_call.1
$region0: #{tpu_custom_call.1}
  #allocation0 [shape = 'u32[]', space=smem, size = 0x4, offset = 0x4, fixed_abs, tag = 'smem constant byte address 0x4 - core index']
  #allocation1 [shape = 'u32[144,128]{1,0:T(1,128)}', space=vmem, size = 0x12000, scoped, tag = 'internal scratch']
  %s0 = inlined_call_operand.hbm [shape: f32[16,16], index: 0, kind: input, shape index: {}]
  %s1 = inlined_call_operand.hbm [shape: bf16[16,384], index: 1, kind: input, shape index: {}]
  %s2 = inlined_call_operand.vmem [shape: f32[1,384], index: 2, kind: input, shape index: {}]
  %s3 = inlined_call_operand.hbm [shape: bf16[128,128], index: 3, kind: input, shape index: {}]
  %s4 = inlined_call_operand.hbm [shape: bf16[128,128], index: 4, kind: input, shape index: {}]
  %s5 = inlined_call_operand.hbm [shape: bf16[128,128], index: 5, kind: input, shape index: {}]
  %s6 = inlined_call_operand.vmem [shape: f32[1,128], index: 6, kind: input, shape index: {}]
  %s7 = inlined_call_operand.hbm [shape: f32[16,128], index: 7, kind: output, shape index: {}]
  %s8 = sld [smem:[#allocation0]]
  $region58: #{tpu_custom_call.1} parent=0
    _
  %s10 = ssub.s32 1, %s8
  %s11 = scalar_select 0, %s10, %s8
  $region1: #{tpu_custom_call.1} parent=0
    #allocation2 [shape = 'u8[8192]{0}', space=vmem, size = 0x2000, scoped, tag = 'input window, operand 0, single buffered']
    #allocation3 [shape = 's32[1]{0}', space=sflag, size = 0x4, scoped, tag = 'scoped memory for tpu_custom_call.1']
    #allocation4 [shape = 's32[1]{0}', space=sflag, size = 0x4, scoped, tag = 'scoped memory for tpu_custom_call.1']
    #allocation5 [shape = 'u8[12288]{0}', space=vmem, size = 0x3000, scoped, tag = 'input window, operand 1, single buffered']
    #allocation6 [shape = 's32[1]{0}', space=sflag, size = 0x4, scoped, tag = 'scoped memory for tpu_custom_call.1']
    #allocation7 [shape = 'u8[32768]{0}', space=vmem, size = 0x8000, scoped, tag = 'input window, operand 3, single buffered']
    #allocation8 [shape = 'u8[32768]{0}', space=vmem, size = 0x8000, scoped, tag = 'input window, operand 4, single buffered']
    #allocation9 [shape = 's32[1]{0}', space=sflag, size = 0x4, scoped, tag = 'scoped memory for tpu_custom_call.1']
    #allocation10 [shape = 'u8[32768]{0}', space=vmem, size = 0x8000, scoped, tag = 'input window, operand 5, single buffered']
    #allocation11 [shape = 'u8[8192]{0}', space=vmem, size = 0x2000, scoped, tag = 'output window, operand 0, single buffered']
    %12 = vsyncpa [#allocation3], 0
    %13 = vsyncpa [#allocation6], 0
    %14 = vsyncpa [#allocation9], 0
    %15 = vsyncpa [#allocation4], 0
    // Predicated region
    $region2: #{tpu_custom_call.1} parent=1 // pred_check
      _
    $region3: #{tpu_custom_call.1} parent=1 // pred_check_branch
      %17 = sbr.rel (0) target = $region5
    $region4: #{tpu_custom_call.1} parent=1 // pred_region
      %s19 = ssub.s32 256, 256
      %20 = vsyncadd [#allocation3], %s19
      %s21 = sshll.u32 [#allocation2], 4
      %s22 = int_to_ptr.vmem [resolvable:$true] %s21
      %27 = dma.hbm_to_vmem [thread:$0]  %s0, 256, %s22, [#allocation3], 128, 128, 8
    $region5: #{tpu_custom_call.1} parent=1 // pred_fallthru
      _
    // Predicated region
    $region6: #{tpu_custom_call.1} parent=1 // pred_check
      _
    $region7: #{tpu_custom_call.1} parent=1 // pred_check_branch
      %29 = sbr.rel (0) target = $region9
    $region8: #{tpu_custom_call.1} parent=1 // pred_region
      %s31 = ssub.s32 384, 384
      %32 = vsyncadd [#allocation6], %s31
      %s33 = sshll.u32 [#allocation5], 4
      %s34 = int_to_ptr.vmem [resolvable:$true] %s33
      %39 = dma.hbm_to_vmem [thread:$0]  %s1, 384, %s34, [#allocation6], 192, 192, 12
    $region9: #{tpu_custom_call.1} parent=1 // pred_fallthru
      _
    // Predicated region
    $region10: #{tpu_custom_call.1} parent=1 // pred_check
      _
    $region11: #{tpu_custom_call.1} parent=1 // pred_check_branch
      %41 = sbr.rel (0) target = $region13
    $region12: #{tpu_custom_call.1} parent=1 // pred_region
      _
    $region13: #{tpu_custom_call.1} parent=1 // pred_fallthru
      _
    // Predicated region
    $region14: #{tpu_custom_call.1} parent=1 // pred_check
      _
    $region15: #{tpu_custom_call.1} parent=1 // pred_check_branch
      %43 = sbr.rel (0) target = $region17
    $region16: #{tpu_custom_call.1} parent=1 // pred_region
      %s45 = ssub.s32 1024, 1024
      %46 = vsyncadd [#allocation6], %s45
      %s47 = sshll.u32 [#allocation7], 4
      %s48 = int_to_ptr.vmem [resolvable:$true] %s47
      %53 = dma.hbm_to_vmem [thread:$0]  %s3, 1024, %s48, [#allocation6], 64, 64, 4
    $region17: #{tpu_custom_call.1} parent=1 // pred_fallthru
      _
    // Predicated region
    $region18: #{tpu_custom_call.1} parent=1 // pred_check
      _
    $region19: #{tpu_custom_call.1} parent=1 // pred_check_branch
      %55 = sbr.rel (0) target = $region21
    $region20: #{tpu_custom_call.1} parent=1 // pred_region
      %s57 = ssub.s32 1024, 1024
      %58 = vsyncadd [#allocation9], %s57
      %s59 = sshll.u32 [#allocation8], 4
      %s60 = int_to_ptr.vmem [resolvable:$true] %s59
      %65 = dma.hbm_to_vmem [thread:$0]  %s4, 1024, %s60, [#allocation9], 64, 64, 4
    $region21: #{tpu_custom_call.1} parent=1 // pred_fallthru
      _
    // Predicated region
    $region22: #{tpu_custom_call.1} parent=1 // pred_check
      _
    $region23: #{tpu_custom_call.1} parent=1 // pred_check_branch
      %67 = sbr.rel (0) target = $region25
    $region24: #{tpu_custom_call.1} parent=1 // pred_region
      %s69 = ssub.s32 1024, 1024
      %70 = vsyncadd [#allocation9], %s69
      %s71 = sshll.u32 [#allocation10], 4
      %s72 = int_to_ptr.vmem [resolvable:$true] %s71
      %77 = dma.hbm_to_vmem [thread:$0]  %s5, 1024, %s72, [#allocation9], 64, 64, 4
    $region25: #{tpu_custom_call.1} parent=1 // pred_fallthru
      _
    // Predicated region
    $region26: #{tpu_custom_call.1} parent=1 // pred_check
      _
    $region27: #{tpu_custom_call.1} parent=1 // pred_check_branch
      %79 = sbr.rel (0) target = $region29
    $region28: #{tpu_custom_call.1} parent=1 // pred_region
      _
    $region29: #{tpu_custom_call.1} parent=1 // pred_fallthru
      _
    // Predicated region
    $region30: #{tpu_custom_call.1} parent=1 // pred_check
      _
    $region31: #{tpu_custom_call.1} parent=1 // pred_check_branch
      %81 = sbr.rel (0) target = $region33
    $region32: #{tpu_custom_call.1} parent=1 // pred_region
      %82 = dma.done [#allocation3], 256
    $region33: #{tpu_custom_call.1} parent=1 // pred_fallthru
      _
    // Predicated region
    $region34: #{tpu_custom_call.1} parent=1 // pred_check
      _
    $region35: #{tpu_custom_call.1} parent=1 // pred_check_branch
      %84 = sbr.rel (0) target = $region37
    $region36: #{tpu_custom_call.1} parent=1 // pred_region
      %85 = dma.done [#allocation6], 384
    $region37: #{tpu_custom_call.1} parent=1 // pred_fallthru
      _
    // Predicated region
    $region38: #{tpu_custom_call.1} parent=1 // pred_check
      _
    $region39: #{tpu_custom_call.1} parent=1 // pred_check_branch
      %87 = sbr.rel (0) target = $region41
    $region40: #{tpu_custom_call.1} parent=1 // pred_region
      %88 = dma.done [#allocation6], 1024
    $region41: #{tpu_custom_call.1} parent=1 // pred_fallthru
      _
    // Predicated region
    $region42: #{tpu_custom_call.1} parent=1 // pred_check
      _
    $region43: #{tpu_custom_call.1} parent=1 // pred_check_branch
      %90 = sbr.rel (0) target = $region45
    $region44: #{tpu_custom_call.1} parent=1 // pred_region
      %91 = dma.done [#allocation9], 1024
    $region45: #{tpu_custom_call.1} parent=1 // pred_fallthru
      _
    // Predicated region
    $region46: #{tpu_custom_call.1} parent=1 // pred_check
      _
    $region47: #{tpu_custom_call.1} parent=1 // pred_check_branch
      %93 = sbr.rel (0) target = $region49
    $region48: #{tpu_custom_call.1} parent=1 // pred_region
      %94 = dma.done [#allocation9], 1024
    $region49: #{tpu_custom_call.1} parent=1 // pred_fallthru
      _
    %v96 = vld [vmem:[#allocation2] sm:$0xff]
    %v97 = vld [vmem:[#allocation2 + $0x8] sm:$0xff]
    %v98 = vpack.c.bf16 %v97, %v96
    %v99 = vld [vmem:[#allocation5] sm:$0xff]
    %v100 = vld [vmem:[#allocation5 + $0x8] sm:$0xf]
    %v101 = vld [vmem:[#allocation5 + $0xc] sm:$0xff]
    %v102 = vld [vmem:[#allocation5 + $0x14] sm:$0xf]
    %v103 = vld [vmem:[%s2] sm:$0x7]
    %v105 = vlaneseq
    %v106 = vshrl.u32 %v105, 7
    %v107 = vsub.s32 0, %v106
    %v108 = vrot.slane %v103, %v107
    %v109 = vlaneseq
    %v110 = vshrl.u32 %v109, 7
    %v111 = vsub.s32 1, %v110
    %v112 = vrot.slane %v103, %v111
    %v113 = vlaneseq
    %v114 = vshrl.u32 %v113, 7
    %v115 = vsub.s32 2, %v114
    %v116 = vrot.slane %v103, %v115
    %v124 = vunpack.c.l.b16 %v99
    %v125 = vunpack.c.h.b16 %v99
    %v126 = vunpack.c.l.b16 %v100
    %v127 = vunpack.c.l.b16 %v101
    %v128 = vunpack.c.h.b16 %v101
    %v129 = vunpack.c.l.b16 %v102
    %v130 = vpack.c.b16 %v127, %v124
    %v131 = vpack.c.b16 %v128, %v125
    %v132 = vpack.c.b16 %v129, %v126
    %vm136 = vcmask 130048
    %v138 = vsel %vm136, %v98, 0
    %140 = vmatprep.subr.bf16.mxu0 %v131
    %141 = vmatpush1.bf16.msra.mxu0 %v130
    %142 = vmatprep.subr.bf16.mxu0 0
    %143 = vmatpush1.bf16.msra.mxu0 0
    %144 = vmatprep.subr.bf16.mxu0 0
    %145 = vmatpush1.bf16.msra.mxu0 0
    %146 = vmatprep.subr.bf16.mxu0 0
    %147 = vmatpush1.bf16.msra.mxu0 0
    %148 = vmatprep.subr.bf16.mxu0 0
    %149 = vmatpush1.bf16.msra.mxu0 0
    %150 = vmatprep.subr.bf16.mxu0 0
    %151 = vmatpush1.bf16.msra.mxu0 0
    %152 = vmatprep.subr.bf16.mxu0 0
    %153 = vmatpush1.bf16.msra.mxu0 0
    %154 = vmatprep.subr.bf16.mxu0 0
    %155 = vmatpush1.bf16.msra.mxu0 0
    %156 = vmatprep.subr.bf16.mxu0 0
    %157 = vmatpush1.bf16.msra.mxu0 0
    %158 = vmatprep.subr.bf16.mxu0 0
    %159 = vmatpush1.bf16.msra.mxu0 0
    %160 = vmatprep.subr.bf16.mxu0 0
    %161 = vmatpush1.bf16.msra.mxu0 0
    %162 = vmatprep.subr.bf16.mxu0 0
    %163 = vmatpush1.bf16.msra.mxu0 0
    %164 = vmatprep.subr.bf16.mxu0 0
    %165 = vmatpush1.bf16.msra.mxu0 0
    %166 = vmatprep.subr.bf16.mxu0 0
    %167 = vmatpush1.bf16.msra.mxu0 0
    %168 = vmatprep.subr.bf16.mxu0 0
    %169 = vmatpush1.bf16.msra.mxu0 0
    %170 = vmatprep.subr.bf16.mxu0 0
    %171 = vmatpush1.bf16.msra.mxu0 0
    %172 = vmatprep.mubr.bf16.mxu0 0
    %173 = vmatmul.mubr.bf16.gmra.mrb[0].mxu0 %v138
    %v174 = vpop.f32.mrb[0].mxu0
    %v175 = vadd.f32 %v108, %v174
    %v176 = vpop.f32.mrb[0].mxu0
    %v177 = vadd.f32 %v112, %v176
    %v178 = vpop.f32.mrb[0].mxu0
    %v179 = vadd.f32 %v108, %v178
    %v180 = vpop.f32.mrb[0].mxu0
    %v181 = vadd.f32 %v112, %v180
    %182 = vdwg.mxu0
    %183 = vmatprep.subr.bf16.mxu0 0
    %184 = vmatpush1.bf16.msra.mxu0 %v132
    %185 = vmatprep.subr.bf16.mxu0 0
    %186 = vmatpush1.bf16.msra.mxu0 0
    %187 = vmatprep.subr.bf16.mxu0 0
    %188 = vmatpush1.bf16.msra.mxu0 0
    %189 = vmatprep.subr.bf16.mxu0 0
    %190 = vmatpush1.bf16.msra.mxu0 0
    %191 = vmatprep.subr.bf16.mxu0 0
    %192 = vmatpush1.bf16.msra.mxu0 0
    %193 = vmatprep.subr.bf16.mxu0 0
    %194 = vmatpush1.bf16.msra.mxu0 0
    %195 = vmatprep.subr.bf16.mxu0 0
    %196 = vmatpush1.bf16.msra.mxu0 0
    %197 = vmatprep.subr.bf16.mxu0 0
    %198 = vmatpush1.bf16.msra.mxu0 0
    %199 = vmatprep.subr.bf16.mxu0 0
    %200 = vmatpush1.bf16.msra.mxu0 0
    %201 = vmatprep.subr.bf16.mxu0 0
    %202 = vmatpush1.bf16.msra.mxu0 0
    %203 = vmatprep.subr.bf16.mxu0 0
    %204 = vmatpush1.bf16.msra.mxu0 0
    %205 = vmatprep.subr.bf16.mxu0 0
    %206 = vmatpush1.bf16.msra.mxu0 0
    %207 = vmatprep.subr.bf16.mxu0 0
    %208 = vmatpush1.bf16.msra.mxu0 0
    %209 = vmatprep.subr.bf16.mxu0 0
    %210 = vmatpush1.bf16.msra.mxu0 0
    %211 = vmatprep.subr.bf16.mxu0 0
    %212 = vmatpush1.bf16.msra.mxu0 0
    %213 = vmatprep.subr.bf16.mxu0 0
    %214 = vmatpush1.bf16.msra.mxu0 0
    %215 = vmatprep.mubr.bf16.mxu0 0
    %216 = vmatmul.mubr.bf16.gmra.mrb[0].mxu0 %v138
    %v217 = vpop.f32.mrb[0].mxu0
    %v218 = vadd.f32 %v116, %v217
    %v219 = vpop.f32.mrb[0].mxu0
    %v220 = vpop.f32.mrb[0].mxu0
    %v221 = vadd.f32 %v116, %v220
    %v222 = vpop.f32.mrb[0].mxu0
    %223 = vdwg.mxu0
    %v224 = vxor.u32 %v175, 2147483648
    %v225 = vxor.u32 %v179, 2147483648
    %v226 = vmul.f32 %v224, 1.442695
    %v227 = vpow.pop %v226
    %v228 = vmul.f32 %v225, 1.442695
    %v229 = vpow.pop %v228
    %v230 = vadd.f32 %v227, 1.0
    %v231 = vadd.f32 %v229, 1.0
    %v232 = vrcp.pop %v230
    %v233 = vmul.f32 1.0, %v232
    %v234 = vrcp.pop %v231
    %v235 = vmul.f32 1.0, %v234
    %v236 = vmul.f32 %v175, %v233
    %v237 = vmul.f32 %v179, %v235
    %v238 = vpack.c.bf16 %v237, %v236
    %v239 = vld [vmem:[#allocation7] sm:$0xf]
    %v240 = vld [vmem:[#allocation7 + $0x4] sm:$0xf]
    %v241 = vld [vmem:[#allocation7 + $0x8] sm:$0xf]
    %v242 = vld [vmem:[#allocation7 + $0xc] sm:$0xf]
    %v243 = vld [vmem:[#allocation7 + $0x10] sm:$0xf]
    %v244 = vld [vmem:[#allocation7 + $0x14] sm:$0xf]
    %v245 = vld [vmem:[#allocation7 + $0x18] sm:$0xf]
    %v246 = vld [vmem:[#allocation7 + $0x1c] sm:$0xf]
    %v247 = vld [vmem:[#allocation7 + $0x20] sm:$0xf]
    %v248 = vld [vmem:[#allocation7 + $0x24] sm:$0xf]
    %v249 = vld [vmem:[#allocation7 + $0x28] sm:$0xf]
    %v250 = vld [vmem:[#allocation7 + $0x2c] sm:$0xf]
    %v251 = vld [vmem:[#allocation7 + $0x30] sm:$0xf]
    %v252 = vld [vmem:[#allocation7 + $0x34] sm:$0xf]
    %v253 = vld [vmem:[#allocation7 + $0x38] sm:$0xf]
    %v254 = vld [vmem:[#allocation7 + $0x3c] sm:$0xf]
    %v271 = vunpack.c.l.b16 %v239
    %v272 = vunpack.c.l.b16 %v240
    %v273 = vunpack.c.l.b16 %v241
    %v274 = vunpack.c.l.b16 %v242
    %v275 = vunpack.c.l.b16 %v243
    %v276 = vunpack.c.l.b16 %v244
    %v277 = vunpack.c.l.b16 %v245
    %v278 = vunpack.c.l.b16 %v246
    %v279 = vunpack.c.l.b16 %v247
    %v280 = vunpack.c.l.b16 %v248
    %v281 = vunpack.c.l.b16 %v249
    %v282 = vunpack.c.l.b16 %v250
    %v283 = vunpack.c.l.b16 %v251
    %v284 = vunpack.c.l.b16 %v252
    %v285 = vunpack.c.l.b16 %v253
    %v286 = vunpack.c.l.b16 %v254
    %v287 = vpack.c.b16 %v272, %v271
    %v288 = vpack.c.b16 %v274, %v273
    %v289 = vpack.c.b16 %v276, %v275
    %v290 = vpack.c.b16 %v278, %v277
    %v291 = vpack.c.b16 %v280, %v279
    %v292 = vpack.c.b16 %v282, %v281
    %v293 = vpack.c.b16 %v284, %v283
    %v294 = vpack.c.b16 %v286, %v285
    %303 = vmatprep.subr.bf16.mxu0 0
    %304 = vmatpush1.bf16.msra.mxu0 %v287
    %305 = vmatprep.subr.bf16.mxu0 0
    %306 = vmatpush1.bf16.msra.mxu0 %v288
    %307 = vmatprep.subr.bf16.mxu0 0
    %308 = vmatpush1.bf16.msra.mxu0 %v289
    %309 = vmatprep.subr.bf16.mxu0 0
    %310 = vmatpush1.bf16.msra.mxu0 %v290
    %311 = vmatprep.subr.bf16.mxu0 0
    %312 = vmatpush1.bf16.msra.mxu0 %v291
    %313 = vmatprep.subr.bf16.mxu0 0
    %314 = vmatpush1.bf16.msra.mxu0 %v292
    %315 = vmatprep.subr.bf16.mxu0 0
    %316 = vmatpush1.bf16.msra.mxu0 %v293
    %317 = vmatprep.subr.bf16.mxu0 0
    %318 = vmatpush1.bf16.msra.mxu0 %v294
    %319 = vmatprep.subr.bf16.mxu0 0
    %320 = vmatpush1.bf16.msra.mxu0 0
    %321 = vmatprep.subr.bf16.mxu0 0
    %322 = vmatpush1.bf16.msra.mxu0 0
    %323 = vmatprep.subr.bf16.mxu0 0
    %324 = vmatpush1.bf16.msra.mxu0 0
    %325 = vmatprep.subr.bf16.mxu0 0
    %326 = vmatpush1.bf16.msra.mxu0 0
    %327 = vmatprep.subr.bf16.mxu0 0
    %328 = vmatpush1.bf16.msra.mxu0 0
    %329 = vmatprep.subr.bf16.mxu0 0
    %330 = vmatpush1.bf16.msra.mxu0 0
    %331 = vmatprep.subr.bf16.mxu0 0
    %332 = vmatpush1.bf16.msra.mxu0 0
    %333 = vmatprep.subr.bf16.mxu0 0
    %334 = vmatpush1.bf16.msra.mxu0 0
    %335 = vmatprep.mubr.bf16.mxu0 0
    %336 = vmatmul.mubr.bf16.gmra.mrb[0].mxu0 %v238
    %v337 = vpop.f32.mrb[0].mxu0
    %v338 = vadd.f32 %v177, %v337
    %v339 = vpop.f32.mrb[0].mxu0
    %v340 = vpop.f32.mrb[0].mxu0
    %v341 = vadd.f32 %v181, %v340
    %v342 = vpop.f32.mrb[0].mxu0
    %343 = vdwg.mxu0
    %v344 = vxor.u32 %v338, 2147483648
    %v345 = vxor.u32 %v341, 2147483648
    %v346 = vmul.f32 %v344, 1.442695
    %v347 = vpow.pop %v346
    %v348 = vmul.f32 %v345, 1.442695
    %v349 = vpow.pop %v348
    %v350 = vadd.f32 %v347, 1.0
    %v351 = vadd.f32 %v349, 1.0
    %v352 = vrcp.pop %v350
    %v353 = vmul.f32 1.0, %v352
    %v354 = vrcp.pop %v351
    %v355 = vmul.f32 1.0, %v354
    %v356 = vmul.f32 %v338, %v353
    %v357 = vmul.f32 %v341, %v355
    %v358 = vpack.c.bf16 %v357, %v356
    %v359 = vld [vmem:[#allocation8] sm:$0xf]
    %v360 = vld [vmem:[#allocation8 + $0x4] sm:$0xf]
    %v361 = vld [vmem:[#allocation8 + $0x8] sm:$0xf]
    %v362 = vld [vmem:[#allocation8 + $0xc] sm:$0xf]
    %v363 = vld [vmem:[#allocation8 + $0x10] sm:$0xf]
    %v364 = vld [vmem:[#allocation8 + $0x14] sm:$0xf]
    %v365 = vld [vmem:[#allocation8 + $0x18] sm:$0xf]
    %v366 = vld [vmem:[#allocation8 + $0x1c] sm:$0xf]
    %v367 = vld [vmem:[#allocation8 + $0x20] sm:$0xf]
    %v368 = vld [vmem:[#allocation8 + $0x24] sm:$0xf]
    %v369 = vld [vmem:[#allocation8 + $0x28] sm:$0xf]
    %v370 = vld [vmem:[#allocation8 + $0x2c] sm:$0xf]
    %v371 = vld [vmem:[#allocation8 + $0x30] sm:$0xf]
    %v372 = vld [vmem:[#allocation8 + $0x34] sm:$0xf]
    %v373 = vld [vmem:[#allocation8 + $0x38] sm:$0xf]
    %v374 = vld [vmem:[#allocation8 + $0x3c] sm:$0xf]
    %v391 = vunpack.c.l.b16 %v359
    %v392 = vunpack.c.l.b16 %v360
    %v393 = vunpack.c.l.b16 %v361
    %v394 = vunpack.c.l.b16 %v362
    %v395 = vunpack.c.l.b16 %v363
    %v396 = vunpack.c.l.b16 %v364
    %v397 = vunpack.c.l.b16 %v365
    %v398 = vunpack.c.l.b16 %v366
    %v399 = vunpack.c.l.b16 %v367
    %v400 = vunpack.c.l.b16 %v368
    %v401 = vunpack.c.l.b16 %v369
    %v402 = vunpack.c.l.b16 %v370
    %v403 = vunpack.c.l.b16 %v371
    %v404 = vunpack.c.l.b16 %v372
    %v405 = vunpack.c.l.b16 %v373
    %v406 = vunpack.c.l.b16 %v374
    %v407 = vpack.c.b16 %v392, %v391
    %v408 = vpack.c.b16 %v394, %v393
    %v409 = vpack.c.b16 %v396, %v395
    %v410 = vpack.c.b16 %v398, %v397
    %v411 = vpack.c.b16 %v400, %v399
    %v412 = vpack.c.b16 %v402, %v401
    %v413 = vpack.c.b16 %v404, %v403
    %v414 = vpack.c.b16 %v406, %v405
    %423 = vmatprep.subr.bf16.mxu0 0
    %424 = vmatpush1.bf16.msra.mxu0 %v407
    %425 = vmatprep.subr.bf16.mxu0 0
    %426 = vmatpush1.bf16.msra.mxu0 %v408
    %427 = vmatprep.subr.bf16.mxu0 0
    %428 = vmatpush1.bf16.msra.mxu0 %v409
    %429 = vmatprep.subr.bf16.mxu0 0
    %430 = vmatpush1.bf16.msra.mxu0 %v410
    %431 = vmatprep.subr.bf16.mxu0 0
    %432 = vmatpush1.bf16.msra.mxu0 %v411
    %433 = vmatprep.subr.bf16.mxu0 0
    %434 = vmatpush1.bf16.msra.mxu0 %v412
    %435 = vmatprep.subr.bf16.mxu0 0
    %436 = vmatpush1.bf16.msra.mxu0 %v413
    %437 = vmatprep.subr.bf16.mxu0 0
    %438 = vmatpush1.bf16.msra.mxu0 %v414
    %439 = vmatprep.subr.bf16.mxu0 0
    %440 = vmatpush1.bf16.msra.mxu0 0
    %441 = vmatprep.subr.bf16.mxu0 0
    %442 = vmatpush1.bf16.msra.mxu0 0
    %443 = vmatprep.subr.bf16.mxu0 0
    %444 = vmatpush1.bf16.msra.mxu0 0
    %445 = vmatprep.subr.bf16.mxu0 0
    %446 = vmatpush1.bf16.msra.mxu0 0
    %447 = vmatprep.subr.bf16.mxu0 0
    %448 = vmatpush1.bf16.msra.mxu0 0
    %449 = vmatprep.subr.bf16.mxu0 0
    %450 = vmatpush1.bf16.msra.mxu0 0
    %451 = vmatprep.subr.bf16.mxu0 0
    %452 = vmatpush1.bf16.msra.mxu0 0
    %453 = vmatprep.subr.bf16.mxu0 0
    %454 = vmatpush1.bf16.msra.mxu0 0
    %455 = vmatprep.mubr.bf16.mxu0 0
    %456 = vmatmul.mubr.bf16.gmra.mrb[0].mxu0 %v358
    %v457 = vpop.f32.mrb[0].mxu0
    %v458 = vadd.f32 %v218, %v457
    %v459 = vpop.f32.mrb[0].mxu0
    %v460 = vpop.f32.mrb[0].mxu0
    %v461 = vadd.f32 %v221, %v460
    %v462 = vpop.f32.mrb[0].mxu0
    %463 = vdwg.mxu0
    %v464 = vxor.u32 %v458, 2147483648
    %v465 = vxor.u32 %v461, 2147483648
    %v466 = vmul.f32 %v464, 1.442695
    %v467 = vpow.pop %v466
    %v468 = vmul.f32 %v465, 1.442695
    %v469 = vpow.pop %v468
    %v470 = vadd.f32 %v467, 1.0
    %v471 = vadd.f32 %v469, 1.0
    %v472 = vrcp.pop %v470
    %v473 = vmul.f32 1.0, %v472
    %v474 = vrcp.pop %v471
    %v475 = vmul.f32 1.0, %v474
    %v476 = vmul.f32 %v458, %v473
    %v477 = vmul.f32 %v461, %v475
    %v478 = vpack.c.bf16 %v477, %v476
    %v479 = vld [vmem:[#allocation10] sm:$0xf]
    %v480 = vld [vmem:[#allocation10 + $0x4] sm:$0xf]
    %v481 = vld [vmem:[#allocation10 + $0x8] sm:$0xf]
    %v482 = vld [vmem:[#allocation10 + $0xc] sm:$0xf]
    %v483 = vld [vmem:[#allocation10 + $0x10] sm:$0xf]
    %v484 = vld [vmem:[#allocation10 + $0x14] sm:$0xf]
    %v485 = vld [vmem:[#allocation10 + $0x18] sm:$0xf]
    %v486 = vld [vmem:[#allocation10 + $0x1c] sm:$0xf]
    %v487 = vld [vmem:[#allocation10 + $0x20] sm:$0xf]
    %v488 = vld [vmem:[#allocation10 + $0x24] sm:$0xf]
    %v489 = vld [vmem:[#allocation10 + $0x28] sm:$0xf]
    %v490 = vld [vmem:[#allocation10 + $0x2c] sm:$0xf]
    %v491 = vld [vmem:[#allocation10 + $0x30] sm:$0xf]
    %v492 = vld [vmem:[#allocation10 + $0x34] sm:$0xf]
    %v493 = vld [vmem:[#allocation10 + $0x38] sm:$0xf]
    %v494 = vld [vmem:[#allocation10 + $0x3c] sm:$0xf]
    %v495 = vld [vmem:[%s6] sm:$0x1]
    %v497 = vlaneseq
    %v498 = vshrl.u32 %v497, 7
    %v499 = vsub.s32 0, %v498
    %v500 = vrot.slane %v495, %v499
    %v518 = vunpack.c.l.b16 %v479
    %v519 = vunpack.c.l.b16 %v480
    %v520 = vunpack.c.l.b16 %v481
    %v521 = vunpack.c.l.b16 %v482
    %v522 = vunpack.c.l.b16 %v483
    %v523 = vunpack.c.l.b16 %v484
    %v524 = vunpack.c.l.b16 %v485
    %v525 = vunpack.c.l.b16 %v486
    %v526 = vunpack.c.l.b16 %v487
    %v527 = vunpack.c.l.b16 %v488
    %v528 = vunpack.c.l.b16 %v489
    %v529 = vunpack.c.l.b16 %v490
    %v530 = vunpack.c.l.b16 %v491
    %v531 = vunpack.c.l.b16 %v492
    %v532 = vunpack.c.l.b16 %v493
    %v533 = vunpack.c.l.b16 %v494
    %v534 = vpack.c.b16 %v519, %v518
    %v535 = vpack.c.b16 %v521, %v520
    %v536 = vpack.c.b16 %v523, %v522
    %v537 = vpack.c.b16 %v525, %v524
    %v538 = vpack.c.b16 %v527, %v526
    %v539 = vpack.c.b16 %v529, %v528
    %v540 = vpack.c.b16 %v531, %v530
    %v541 = vpack.c.b16 %v533, %v532
    %550 = vmatprep.subr.bf16.mxu0 0
    %551 = vmatpush1.bf16.msra.mxu0 %v534
    %552 = vmatprep.subr.bf16.mxu0 0
    %553 = vmatpush1.bf16.msra.mxu0 %v535
    %554 = vmatprep.subr.bf16.mxu0 0
    %555 = vmatpush1.bf16.msra.mxu0 %v536
    %556 = vmatprep.subr.bf16.mxu0 0
    %557 = vmatpush1.bf16.msra.mxu0 %v537
    %558 = vmatprep.subr.bf16.mxu0 0
    %559 = vmatpush1.bf16.msra.mxu0 %v538
    %560 = vmatprep.subr.bf16.mxu0 0
    %561 = vmatpush1.bf16.msra.mxu0 %v539
    %562 = vmatprep.subr.bf16.mxu0 0
    %563 = vmatpush1.bf16.msra.mxu0 %v540
    %564 = vmatprep.subr.bf16.mxu0 0
    %565 = vmatpush1.bf16.msra.mxu0 %v541
    %566 = vmatprep.subr.bf16.mxu0 0
    %567 = vmatpush1.bf16.msra.mxu0 0
    %568 = vmatprep.subr.bf16.mxu0 0
    %569 = vmatpush1.bf16.msra.mxu0 0
    %570 = vmatprep.subr.bf16.mxu0 0
    %571 = vmatpush1.bf16.msra.mxu0 0
    %572 = vmatprep.subr.bf16.mxu0 0
    %573 = vmatpush1.bf16.msra.mxu0 0
    %574 = vmatprep.subr.bf16.mxu0 0
    %575 = vmatpush1.bf16.msra.mxu0 0
    %576 = vmatprep.subr.bf16.mxu0 0
    %577 = vmatpush1.bf16.msra.mxu0 0
    %578 = vmatprep.subr.bf16.mxu0 0
    %579 = vmatpush1.bf16.msra.mxu0 0
    %580 = vmatprep.subr.bf16.mxu0 0
    %581 = vmatpush1.bf16.msra.mxu0 0
    %582 = vmatprep.mubr.bf16.mxu0 0
    %583 = vmatmul.mubr.bf16.gmra.mrb[0].mxu0 %v478
    %v584 = vpop.f32.mrb[0].mxu0
    %v585 = vadd.f32 %v500, %v584
    %v586 = vpop.f32.mrb[0].mxu0
    %v587 = vpop.f32.mrb[0].mxu0
    %v588 = vadd.f32 %v500, %v587
    %v589 = vpop.f32.mrb[0].mxu0
    %590 = vdwg.mxu0
    %v591 = vlaneseq
    %v592 = vand.u32 %v591, 127
    %v593 = vmax.f32 %v585, -9.0
    %v594 = vmax.f32 %v588, -9.0
    %v595 = vmin.f32 %v593, 9.0
    %v596 = vmin.f32 %v594, 9.0
    %v597 = vmax.f32 %v585, -5.0
    %v598 = vmax.f32 %v588, -5.0
    %v599 = vmin.f32 %v597, 2.0
    %v600 = vmin.f32 %v598, 2.0
    %v601 = vmul.f32 %v599, 1.442695
    %v602 = vpow.pop %v601
    %v603 = vmul.f32 %v600, 1.442695
    %v604 = vpow.pop %v603
    %vm605 = vcmp.lt.s32.totalorder %v592, 4
    %v606 = vsel %vm605, %v595, %v602
    %v607 = vsel %vm605, %v596, %v604
    %608 = vst [vmem:[#allocation11] sm:$0xff] %v606
    %609 = vst [vmem:[#allocation11 + $0x8] sm:$0xff] %v607
    // Predicated region
    $region50: #{tpu_custom_call.1} parent=1 // pred_check
      _
    $region51: #{tpu_custom_call.1} parent=1 // pred_check_branch
      %611 = sbr.rel (0) target = $region53
    $region52: #{tpu_custom_call.1} parent=1 // pred_region
      %s613 = ssub.s32 256, 256
      %614 = vsyncadd [#allocation4], %s613
      %s615 = sshll.u32 [#allocation11], 4
      %s616 = int_to_ptr.vmem [resolvable:$true] %s615
      %621 = dma.vmem_to_hbm [thread:$0]  %s616, 256, %s7, [#allocation4], 128, 128, 8
    $region53: #{tpu_custom_call.1} parent=1 // pred_fallthru
      _
    // Predicated region
    $region54: #{tpu_custom_call.1} parent=1 // pred_check
      _
    $region55: #{tpu_custom_call.1} parent=1 // pred_check_branch
      %623 = sbr.rel (0) target = $region57
    $region56: #{tpu_custom_call.1} parent=1 // pred_region
      %624 = dma.done [#allocation4], 256
    $region57: #{tpu_custom_call.1} parent=1 // pred_fallthru
      _
    %625 = vsyncpa [#allocation3], 1
    %626 = vsyncpa [#allocation6], 1
    %627 = vsyncpa [#allocation9], 1
    %628 = vsyncpa [#allocation4], 1

// kernel: tpu_custom_call.1
$region0: #{tpu_custom_call.1}
  #allocation0 [shape = 'u32[]', space=smem, size = 0x4, offset = 0x4, fixed_abs, tag = 'smem constant byte address 0x4 - core index']
  #allocation1 [shape = 'u32[144,128]{1,0:T(1,128)}', space=vmem, size = 0x12000, scoped, tag = 'internal scratch']
  %s0 = inlined_call_operand.hbm [shape: f32[16,16], index: 0, kind: input, shape index: {}]
  %s1 = inlined_call_operand.hbm [shape: bf16[16,384], index: 1, kind: input, shape index: {}]
  %s2 = inlined_call_operand.vmem [shape: f32[1,384], index: 2, kind: input, shape index: {}]
  %s3 = inlined_call_operand.hbm [shape: bf16[128,128], index: 3, kind: input, shape index: {}]
  %s4 = inlined_call_operand.hbm [shape: bf16[128,128], index: 4, kind: input, shape index: {}]
  %s5 = inlined_call_operand.hbm [shape: bf16[128,128], index: 5, kind: input, shape index: {}]
  %s6 = inlined_call_operand.vmem [shape: f32[1,128], index: 6, kind: input, shape index: {}]
  %s7 = inlined_call_operand.hbm [shape: f32[16,128], index: 7, kind: output, shape index: {}]
  %s8 = sld [smem:[#allocation0]]
  $region58: #{tpu_custom_call.1} parent=0
    _
  %s10 = ssub.s32 1, %s8
  %s11 = scalar_select 0, %s10, %s8
  $region1: #{tpu_custom_call.1} parent=0
    #allocation2 [shape = 'u8[8192]{0}', space=vmem, size = 0x2000, scoped, tag = 'input window, operand 0, single buffered']
    #allocation3 [shape = 's32[1]{0}', space=sflag, size = 0x4, scoped, tag = 'scoped memory for tpu_custom_call.1']
    #allocation4 [shape = 's32[1]{0}', space=sflag, size = 0x4, scoped, tag = 'scoped memory for tpu_custom_call.1']
    #allocation5 [shape = 'u8[12288]{0}', space=vmem, size = 0x3000, scoped, tag = 'input window, operand 1, single buffered']
    #allocation6 [shape = 's32[1]{0}', space=sflag, size = 0x4, scoped, tag = 'scoped memory for tpu_custom_call.1']
    #allocation7 [shape = 'u8[32768]{0}', space=vmem, size = 0x8000, scoped, tag = 'input window, operand 3, single buffered']
    #allocation8 [shape = 'u8[32768]{0}', space=vmem, size = 0x8000, scoped, tag = 'input window, operand 4, single buffered']
    #allocation9 [shape = 's32[1]{0}', space=sflag, size = 0x4, scoped, tag = 'scoped memory for tpu_custom_call.1']
    #allocation10 [shape = 'u8[32768]{0}', space=vmem, size = 0x8000, scoped, tag = 'input window, operand 5, single buffered']
    #allocation11 [shape = 'u8[8192]{0}', space=vmem, size = 0x2000, scoped, tag = 'output window, operand 0, single buffered']
    %12 = vsyncpa [#allocation3], 0
    %13 = vsyncpa [#allocation6], 0
    %14 = vsyncpa [#allocation9], 0
    %15 = vsyncpa [#allocation4], 0
    // Predicated region
    $region2: #{tpu_custom_call.1} parent=1 // pred_check
      _
    $region3: #{tpu_custom_call.1} parent=1 // pred_check_branch
      %17 = sbr.rel (0) target = $region5
    $region4: #{tpu_custom_call.1} parent=1 // pred_region
      %s19 = ssub.s32 256, 256
      %20 = vsyncadd [#allocation3], %s19
      %s21 = sshll.u32 [#allocation2], 4
      %s22 = int_to_ptr.vmem [resolvable:$true] %s21
      %27 = dma.hbm_to_vmem [thread:$0]  %s0, 256, %s22, [#allocation3], 128, 128, 8
    $region5: #{tpu_custom_call.1} parent=1 // pred_fallthru
      _
    // Predicated region
    $region6: #{tpu_custom_call.1} parent=1 // pred_check
      _
    $region7: #{tpu_custom_call.1} parent=1 // pred_check_branch
      %29 = sbr.rel (0) target = $region9
    $region8: #{tpu_custom_call.1} parent=1 // pred_region
      %s31 = ssub.s32 384, 384
      %32 = vsyncadd [#allocation6], %s31
      %s33 = sshll.u32 [#allocation5], 4
      %s34 = int_to_ptr.vmem [resolvable:$true] %s33
      %39 = dma.hbm_to_vmem [thread:$0]  %s1, 384, %s34, [#allocation6], 192, 192, 12
    $region9: #{tpu_custom_call.1} parent=1 // pred_fallthru
      _
    // Predicated region
    $region10: #{tpu_custom_call.1} parent=1 // pred_check
      _
    $region11: #{tpu_custom_call.1} parent=1 // pred_check_branch
      %41 = sbr.rel (0) target = $region13
    $region12: #{tpu_custom_call.1} parent=1 // pred_region
      _
    $region13: #{tpu_custom_call.1} parent=1 // pred_fallthru
      _
    // Predicated region
    $region14: #{tpu_custom_call.1} parent=1 // pred_check
      _
    $region15: #{tpu_custom_call.1} parent=1 // pred_check_branch
      %43 = sbr.rel (0) target = $region17
    $region16: #{tpu_custom_call.1} parent=1 // pred_region
      %s45 = ssub.s32 1024, 1024
      %46 = vsyncadd [#allocation6], %s45
      %s47 = sshll.u32 [#allocation7], 4
      %s48 = int_to_ptr.vmem [resolvable:$true] %s47
      %53 = dma.hbm_to_vmem [thread:$0]  %s3, 1024, %s48, [#allocation6], 64, 64, 4
    $region17: #{tpu_custom_call.1} parent=1 // pred_fallthru
      _
    // Predicated region
    $region18: #{tpu_custom_call.1} parent=1 // pred_check
      _
    $region19: #{tpu_custom_call.1} parent=1 // pred_check_branch
      %55 = sbr.rel (0) target = $region21
    $region20: #{tpu_custom_call.1} parent=1 // pred_region
      %s57 = ssub.s32 1024, 1024
      %58 = vsyncadd [#allocation9], %s57
      %s59 = sshll.u32 [#allocation8], 4
      %s60 = int_to_ptr.vmem [resolvable:$true] %s59
      %65 = dma.hbm_to_vmem [thread:$0]  %s4, 1024, %s60, [#allocation9], 64, 64, 4
    $region21: #{tpu_custom_call.1} parent=1 // pred_fallthru
      _
    // Predicated region
    $region22: #{tpu_custom_call.1} parent=1 // pred_check
      _
    $region23: #{tpu_custom_call.1} parent=1 // pred_check_branch
      %67 = sbr.rel (0) target = $region25
    $region24: #{tpu_custom_call.1} parent=1 // pred_region
      %s69 = ssub.s32 1024, 1024
      %70 = vsyncadd [#allocation9], %s69
      %s71 = sshll.u32 [#allocation10], 4
      %s72 = int_to_ptr.vmem [resolvable:$true] %s71
      %77 = dma.hbm_to_vmem [thread:$0]  %s5, 1024, %s72, [#allocation9], 64, 64, 4
    $region25: #{tpu_custom_call.1} parent=1 // pred_fallthru
      _
    // Predicated region
    $region26: #{tpu_custom_call.1} parent=1 // pred_check
      _
    $region27: #{tpu_custom_call.1} parent=1 // pred_check_branch
      %79 = sbr.rel (0) target = $region29
    $region28: #{tpu_custom_call.1} parent=1 // pred_region
      _
    $region29: #{tpu_custom_call.1} parent=1 // pred_fallthru
      _
    // Predicated region
    $region30: #{tpu_custom_call.1} parent=1 // pred_check
      _
    $region31: #{tpu_custom_call.1} parent=1 // pred_check_branch
      %81 = sbr.rel (0) target = $region33
    $region32: #{tpu_custom_call.1} parent=1 // pred_region
      %82 = dma.done [#allocation3], 256
    $region33: #{tpu_custom_call.1} parent=1 // pred_fallthru
      _
    // Predicated region
    $region34: #{tpu_custom_call.1} parent=1 // pred_check
      _
    $region35: #{tpu_custom_call.1} parent=1 // pred_check_branch
      %84 = sbr.rel (0) target = $region37
    $region36: #{tpu_custom_call.1} parent=1 // pred_region
      %85 = dma.done [#allocation6], 384
    $region37: #{tpu_custom_call.1} parent=1 // pred_fallthru
      _
    // Predicated region
    $region38: #{tpu_custom_call.1} parent=1 // pred_check
      _
    $region39: #{tpu_custom_call.1} parent=1 // pred_check_branch
      %87 = sbr.rel (0) target = $region41
    $region40: #{tpu_custom_call.1} parent=1 // pred_region
      %88 = dma.done [#allocation6], 1024
    $region41: #{tpu_custom_call.1} parent=1 // pred_fallthru
      _
    // Predicated region
    $region42: #{tpu_custom_call.1} parent=1 // pred_check
      _
    $region43: #{tpu_custom_call.1} parent=1 // pred_check_branch
      %90 = sbr.rel (0) target = $region45
    $region44: #{tpu_custom_call.1} parent=1 // pred_region
      %91 = dma.done [#allocation9], 1024
    $region45: #{tpu_custom_call.1} parent=1 // pred_fallthru
      _
    // Predicated region
    $region46: #{tpu_custom_call.1} parent=1 // pred_check
      _
    $region47: #{tpu_custom_call.1} parent=1 // pred_check_branch
      %93 = sbr.rel (0) target = $region49
    $region48: #{tpu_custom_call.1} parent=1 // pred_region
      %94 = dma.done [#allocation9], 1024
    $region49: #{tpu_custom_call.1} parent=1 // pred_fallthru
      _
    %v96 = vld [vmem:[#allocation2] sm:$0xff]
    %v97 = vld [vmem:[#allocation2 + $0x8] sm:$0xff]
    %v98 = vpack.c.bf16 %v97, %v96
    %v99 = vld [vmem:[#allocation5] sm:$0xff]
    %v100 = vld [vmem:[#allocation5 + $0x8] sm:$0xf]
    %v101 = vld [vmem:[#allocation5 + $0xc] sm:$0xff]
    %v102 = vld [vmem:[#allocation5 + $0x14] sm:$0xf]
    %v103 = vld [vmem:[%s2] sm:$0x7]
    %v105 = vlaneseq
    %v106 = vshrl.u32 %v105, 7
    %v107 = vsub.s32 0, %v106
    %v108 = vrot.slane %v103, %v107
    %v109 = vlaneseq
    %v110 = vshrl.u32 %v109, 7
    %v111 = vsub.s32 1, %v110
    %v112 = vrot.slane %v103, %v111
    %v113 = vlaneseq
    %v114 = vshrl.u32 %v113, 7
    %v115 = vsub.s32 2, %v114
    %v116 = vrot.slane %v103, %v115
    %v124 = vunpack.c.l.b16 %v99
    %v125 = vunpack.c.h.b16 %v99
    %v126 = vunpack.c.l.b16 %v100
    %v127 = vunpack.c.l.b16 %v101
    %v128 = vunpack.c.h.b16 %v101
    %v129 = vunpack.c.l.b16 %v102
    %v130 = vpack.c.b16 %v127, %v124
    %v131 = vpack.c.b16 %v128, %v125
    %v132 = vpack.c.b16 %v129, %v126
    %vm136 = vcmask 130048
    %v138 = vsel %vm136, %v98, 0
    %140 = vmatprep.subr.bf16.mxu0 %v131
    %141 = vmatpush1.bf16.msra.mxu0 %v130
    %142 = vmatprep.subr.bf16.mxu0 0
    %143 = vmatpush1.bf16.msra.mxu0 0
    %144 = vmatprep.subr.bf16.mxu0 0
    %145 = vmatpush1.bf16.msra.mxu0 0
    %146 = vmatprep.subr.bf16.mxu0 0
    %147 = vmatpush1.bf16.msra.mxu0 0
    %148 = vmatprep.subr.bf16.mxu0 0
    %149 = vmatpush1.bf16.msra.mxu0 0
    %150 = vmatprep.subr.bf16.mxu0 0
    %151 = vmatpush1.bf16.msra.mxu0 0
    %152 = vmatprep.subr.bf16.mxu0 0
    %153 = vmatpush1.bf16.msra.mxu0 0
    %154 = vmatprep.subr.bf16.mxu0 0
    %155 = vmatpush1.bf16.msra.mxu0 0
    %156 = vmatprep.subr.bf16.mxu0 0
    %157 = vmatpush1.bf16.msra.mxu0 0
    %158 = vmatprep.subr.bf16.mxu0 0
    %159 = vmatpush1.bf16.msra.mxu0 0
    %160 = vmatprep.subr.bf16.mxu0 0
    %161 = vmatpush1.bf16.msra.mxu0 0
    %162 = vmatprep.subr.bf16.mxu0 0
    %163 = vmatpush1.bf16.msra.mxu0 0
    %164 = vmatprep.subr.bf16.mxu0 0
    %165 = vmatpush1.bf16.msra.mxu0 0
    %166 = vmatprep.subr.bf16.mxu0 0
    %167 = vmatpush1.bf16.msra.mxu0 0
    %168 = vmatprep.subr.bf16.mxu0 0
    %169 = vmatpush1.bf16.msra.mxu0 0
    %170 = vmatprep.subr.bf16.mxu0 0
    %171 = vmatpush1.bf16.msra.mxu0 0
    %172 = vmatprep.mubr.bf16.mxu0 0
    %173 = vmatmul.mubr.bf16.gmra.mrb[0].mxu0 %v138
    %v174 = vpop.f32.mrb[0].mxu0
    %v175 = vadd.f32 %v108, %v174
    %v176 = vpop.f32.mrb[0].mxu0
    %v177 = vadd.f32 %v112, %v176
    %v178 = vpop.f32.mrb[0].mxu0
    %v179 = vadd.f32 %v108, %v178
    %v180 = vpop.f32.mrb[0].mxu0
    %v181 = vadd.f32 %v112, %v180
    %182 = vdwg.mxu0
    %183 = vmatprep.subr.bf16.mxu0 0
    %184 = vmatpush1.bf16.msra.mxu0 %v132
    %185 = vmatprep.subr.bf16.mxu0 0
    %186 = vmatpush1.bf16.msra.mxu0 0
    %187 = vmatprep.subr.bf16.mxu0 0
    %188 = vmatpush1.bf16.msra.mxu0 0
    %189 = vmatprep.subr.bf16.mxu0 0
    %190 = vmatpush1.bf16.msra.mxu0 0
    %191 = vmatprep.subr.bf16.mxu0 0
    %192 = vmatpush1.bf16.msra.mxu0 0
    %193 = vmatprep.subr.bf16.mxu0 0
    %194 = vmatpush1.bf16.msra.mxu0 0
    %195 = vmatprep.subr.bf16.mxu0 0
    %196 = vmatpush1.bf16.msra.mxu0 0
    %197 = vmatprep.subr.bf16.mxu0 0
    %198 = vmatpush1.bf16.msra.mxu0 0
    %199 = vmatprep.subr.bf16.mxu0 0
    %200 = vmatpush1.bf16.msra.mxu0 0
    %201 = vmatprep.subr.bf16.mxu0 0
    %202 = vmatpush1.bf16.msra.mxu0 0
    %203 = vmatprep.subr.bf16.mxu0 0
    %204 = vmatpush1.bf16.msra.mxu0 0
    %205 = vmatprep.subr.bf16.mxu0 0
    %206 = vmatpush1.bf16.msra.mxu0 0
    %207 = vmatprep.subr.bf16.mxu0 0
    %208 = vmatpush1.bf16.msra.mxu0 0
    %209 = vmatprep.subr.bf16.mxu0 0
    %210 = vmatpush1.bf16.msra.mxu0 0
    %211 = vmatprep.subr.bf16.mxu0 0
    %212 = vmatpush1.bf16.msra.mxu0 0
    %213 = vmatprep.subr.bf16.mxu0 0
    %214 = vmatpush1.bf16.msra.mxu0 0
    %215 = vmatprep.mubr.bf16.mxu0 0
    %216 = vmatmul.mubr.bf16.gmra.mrb[0].mxu0 %v138
    %v217 = vpop.f32.mrb[0].mxu0
    %v218 = vadd.f32 %v116, %v217
    %v219 = vpop.f32.mrb[0].mxu0
    %v220 = vpop.f32.mrb[0].mxu0
    %v221 = vadd.f32 %v116, %v220
    %v222 = vpop.f32.mrb[0].mxu0
    %223 = vdwg.mxu0
    %v224 = vxor.u32 %v175, 2147483648
    %v225 = vxor.u32 %v179, 2147483648
    %v226 = vmul.f32 %v224, 1.442695
    %v227 = vpow.pop %v226
    %v228 = vmul.f32 %v225, 1.442695
    %v229 = vpow.pop %v228
    %v230 = vadd.f32 %v227, 1.0
    %v231 = vadd.f32 %v229, 1.0
    %v232 = vrcp.pop %v230
    %v233 = vmul.f32 1.0, %v232
    %v234 = vrcp.pop %v231
    %v235 = vmul.f32 1.0, %v234
    %v236 = vmul.f32 %v175, %v233
    %v237 = vmul.f32 %v179, %v235
    %v238 = vpack.c.bf16 %v237, %v236
    %v239 = vld [vmem:[#allocation7] sm:$0xf]
    %v240 = vld [vmem:[#allocation7 + $0x4] sm:$0xf]
    %v241 = vld [vmem:[#allocation7 + $0x8] sm:$0xf]
    %v242 = vld [vmem:[#allocation7 + $0xc] sm:$0xf]
    %v243 = vld [vmem:[#allocation7 + $0x10] sm:$0xf]
    %v244 = vld [vmem:[#allocation7 + $0x14] sm:$0xf]
    %v245 = vld [vmem:[#allocation7 + $0x18] sm:$0xf]
    %v246 = vld [vmem:[#allocation7 + $0x1c] sm:$0xf]
    %v247 = vld [vmem:[#allocation7 + $0x20] sm:$0xf]
    %v248 = vld [vmem:[#allocation7 + $0x24] sm:$0xf]
    %v249 = vld [vmem:[#allocation7 + $0x28] sm:$0xf]
    %v250 = vld [vmem:[#allocation7 + $0x2c] sm:$0xf]
    %v251 = vld [vmem:[#allocation7 + $0x30] sm:$0xf]
    %v252 = vld [vmem:[#allocation7 + $0x34] sm:$0xf]
    %v253 = vld [vmem:[#allocation7 + $0x38] sm:$0xf]
    %v254 = vld [vmem:[#allocation7 + $0x3c] sm:$0xf]
    %v271 = vunpack.c.l.b16 %v239
    %v272 = vunpack.c.l.b16 %v240
    %v273 = vunpack.c.l.b16 %v241
    %v274 = vunpack.c.l.b16 %v242
    %v275 = vunpack.c.l.b16 %v243
    %v276 = vunpack.c.l.b16 %v244
    %v277 = vunpack.c.l.b16 %v245
    %v278 = vunpack.c.l.b16 %v246
    %v279 = vunpack.c.l.b16 %v247
    %v280 = vunpack.c.l.b16 %v248
    %v281 = vunpack.c.l.b16 %v249
    %v282 = vunpack.c.l.b16 %v250
    %v283 = vunpack.c.l.b16 %v251
    %v284 = vunpack.c.l.b16 %v252
    %v285 = vunpack.c.l.b16 %v253
    %v286 = vunpack.c.l.b16 %v254
    %v287 = vpack.c.b16 %v272, %v271
    %v288 = vpack.c.b16 %v274, %v273
    %v289 = vpack.c.b16 %v276, %v275
    %v290 = vpack.c.b16 %v278, %v277
    %v291 = vpack.c.b16 %v280, %v279
    %v292 = vpack.c.b16 %v282, %v281
    %v293 = vpack.c.b16 %v284, %v283
    %v294 = vpack.c.b16 %v286, %v285
    %303 = vmatprep.subr.bf16.mxu0 0
    %304 = vmatpush1.bf16.msra.mxu0 %v287
    %305 = vmatprep.subr.bf16.mxu0 0
    %306 = vmatpush1.bf16.msra.mxu0 %v288
    %307 = vmatprep.subr.bf16.mxu0 0
    %308 = vmatpush1.bf16.msra.mxu0 %v289
    %309 = vmatprep.subr.bf16.mxu0 0
    %310 = vmatpush1.bf16.msra.mxu0 %v290
    %311 = vmatprep.subr.bf16.mxu0 0
    %312 = vmatpush1.bf16.msra.mxu0 %v291
    %313 = vmatprep.subr.bf16.mxu0 0
    %314 = vmatpush1.bf16.msra.mxu0 %v292
    %315 = vmatprep.subr.bf16.mxu0 0
    %316 = vmatpush1.bf16.msra.mxu0 %v293
    %317 = vmatprep.subr.bf16.mxu0 0
    %318 = vmatpush1.bf16.msra.mxu0 %v294
    %319 = vmatprep.subr.bf16.mxu0 0
    %320 = vmatpush1.bf16.msra.mxu0 0
    %321 = vmatprep.subr.bf16.mxu0 0
    %322 = vmatpush1.bf16.msra.mxu0 0
    %323 = vmatprep.subr.bf16.mxu0 0
    %324 = vmatpush1.bf16.msra.mxu0 0
    %325 = vmatprep.subr.bf16.mxu0 0
    %326 = vmatpush1.bf16.msra.mxu0 0
    %327 = vmatprep.subr.bf16.mxu0 0
    %328 = vmatpush1.bf16.msra.mxu0 0
    %329 = vmatprep.subr.bf16.mxu0 0
    %330 = vmatpush1.bf16.msra.mxu0 0
    %331 = vmatprep.subr.bf16.mxu0 0
    %332 = vmatpush1.bf16.msra.mxu0 0
    %333 = vmatprep.subr.bf16.mxu0 0
    %334 = vmatpush1.bf16.msra.mxu0 0
    %335 = vmatprep.mubr.bf16.mxu0 0
    %336 = vmatmul.mubr.bf16.gmra.mrb[0].mxu0 %v238
    %v337 = vpop.f32.mrb[0].mxu0
    %v338 = vadd.f32 %v177, %v337
    %v339 = vpop.f32.mrb[0].mxu0
    %v340 = vpop.f32.mrb[0].mxu0
    %v341 = vadd.f32 %v181, %v340
    %v342 = vpop.f32.mrb[0].mxu0
    %343 = vdwg.mxu0
    %v344 = vxor.u32 %v338, 2147483648
    %v345 = vxor.u32 %v341, 2147483648
    %v346 = vmul.f32 %v344, 1.442695
    %v347 = vpow.pop %v346
    %v348 = vmul.f32 %v345, 1.442695
    %v349 = vpow.pop %v348
    %v350 = vadd.f32 %v347, 1.0
    %v351 = vadd.f32 %v349, 1.0
    %v352 = vrcp.pop %v350
    %v353 = vmul.f32 1.0, %v352
    %v354 = vrcp.pop %v351
    %v355 = vmul.f32 1.0, %v354
    %v356 = vmul.f32 %v338, %v353
    %v357 = vmul.f32 %v341, %v355
    %v358 = vpack.c.bf16 %v357, %v356
    %v359 = vld [vmem:[#allocation8] sm:$0xf]
    %v360 = vld [vmem:[#allocation8 + $0x4] sm:$0xf]
    %v361 = vld [vmem:[#allocation8 + $0x8] sm:$0xf]
    %v362 = vld [vmem:[#allocation8 + $0xc] sm:$0xf]
    %v363 = vld [vmem:[#allocation8 + $0x10] sm:$0xf]
    %v364 = vld [vmem:[#allocation8 + $0x14] sm:$0xf]
    %v365 = vld [vmem:[#allocation8 + $0x18] sm:$0xf]
    %v366 = vld [vmem:[#allocation8 + $0x1c] sm:$0xf]
    %v367 = vld [vmem:[#allocation8 + $0x20] sm:$0xf]
    %v368 = vld [vmem:[#allocation8 + $0x24] sm:$0xf]
    %v369 = vld [vmem:[#allocation8 + $0x28] sm:$0xf]
    %v370 = vld [vmem:[#allocation8 + $0x2c] sm:$0xf]
    %v371 = vld [vmem:[#allocation8 + $0x30] sm:$0xf]
    %v372 = vld [vmem:[#allocation8 + $0x34] sm:$0xf]
    %v373 = vld [vmem:[#allocation8 + $0x38] sm:$0xf]
    %v374 = vld [vmem:[#allocation8 + $0x3c] sm:$0xf]
    %v391 = vunpack.c.l.b16 %v359
    %v392 = vunpack.c.l.b16 %v360
    %v393 = vunpack.c.l.b16 %v361
    %v394 = vunpack.c.l.b16 %v362
    %v395 = vunpack.c.l.b16 %v363
    %v396 = vunpack.c.l.b16 %v364
    %v397 = vunpack.c.l.b16 %v365
    %v398 = vunpack.c.l.b16 %v366
    %v399 = vunpack.c.l.b16 %v367
    %v400 = vunpack.c.l.b16 %v368
    %v401 = vunpack.c.l.b16 %v369
    %v402 = vunpack.c.l.b16 %v370
    %v403 = vunpack.c.l.b16 %v371
    %v404 = vunpack.c.l.b16 %v372
    %v405 = vunpack.c.l.b16 %v373
    %v406 = vunpack.c.l.b16 %v374
    %v407 = vpack.c.b16 %v392, %v391
    %v408 = vpack.c.b16 %v394, %v393
    %v409 = vpack.c.b16 %v396, %v395
    %v410 = vpack.c.b16 %v398, %v397
    %v411 = vpack.c.b16 %v400, %v399
    %v412 = vpack.c.b16 %v402, %v401
    %v413 = vpack.c.b16 %v404, %v403
    %v414 = vpack.c.b16 %v406, %v405
    %423 = vmatprep.subr.bf16.mxu0 0
    %424 = vmatpush1.bf16.msra.mxu0 %v407
    %425 = vmatprep.subr.bf16.mxu0 0
    %426 = vmatpush1.bf16.msra.mxu0 %v408
    %427 = vmatprep.subr.bf16.mxu0 0
    %428 = vmatpush1.bf16.msra.mxu0 %v409
    %429 = vmatprep.subr.bf16.mxu0 0
    %430 = vmatpush1.bf16.msra.mxu0 %v410
    %431 = vmatprep.subr.bf16.mxu0 0
    %432 = vmatpush1.bf16.msra.mxu0 %v411
    %433 = vmatprep.subr.bf16.mxu0 0
    %434 = vmatpush1.bf16.msra.mxu0 %v412
    %435 = vmatprep.subr.bf16.mxu0 0
    %436 = vmatpush1.bf16.msra.mxu0 %v413
    %437 = vmatprep.subr.bf16.mxu0 0
    %438 = vmatpush1.bf16.msra.mxu0 %v414
    %439 = vmatprep.subr.bf16.mxu0 0
    %440 = vmatpush1.bf16.msra.mxu0 0
    %441 = vmatprep.subr.bf16.mxu0 0
    %442 = vmatpush1.bf16.msra.mxu0 0
    %443 = vmatprep.subr.bf16.mxu0 0
    %444 = vmatpush1.bf16.msra.mxu0 0
    %445 = vmatprep.subr.bf16.mxu0 0
    %446 = vmatpush1.bf16.msra.mxu0 0
    %447 = vmatprep.subr.bf16.mxu0 0
    %448 = vmatpush1.bf16.msra.mxu0 0
    %449 = vmatprep.subr.bf16.mxu0 0
    %450 = vmatpush1.bf16.msra.mxu0 0
    %451 = vmatprep.subr.bf16.mxu0 0
    %452 = vmatpush1.bf16.msra.mxu0 0
    %453 = vmatprep.subr.bf16.mxu0 0
    %454 = vmatpush1.bf16.msra.mxu0 0
    %455 = vmatprep.mubr.bf16.mxu0 0
    %456 = vmatmul.mubr.bf16.gmra.mrb[0].mxu0 %v358
    %v457 = vpop.f32.mrb[0].mxu0
    %v458 = vadd.f32 %v218, %v457
    %v459 = vpop.f32.mrb[0].mxu0
    %v460 = vpop.f32.mrb[0].mxu0
    %v461 = vadd.f32 %v221, %v460
    %v462 = vpop.f32.mrb[0].mxu0
    %463 = vdwg.mxu0
    %v464 = vxor.u32 %v458, 2147483648
    %v465 = vxor.u32 %v461, 2147483648
    %v466 = vmul.f32 %v464, 1.442695
    %v467 = vpow.pop %v466
    %v468 = vmul.f32 %v465, 1.442695
    %v469 = vpow.pop %v468
    %v470 = vadd.f32 %v467, 1.0
    %v471 = vadd.f32 %v469, 1.0
    %v472 = vrcp.pop %v470
    %v473 = vmul.f32 1.0, %v472
    %v474 = vrcp.pop %v471
    %v475 = vmul.f32 1.0, %v474
    %v476 = vmul.f32 %v458, %v473
    %v477 = vmul.f32 %v461, %v475
    %v478 = vpack.c.bf16 %v477, %v476
    %v479 = vld [vmem:[#allocation10] sm:$0xf]
    %v480 = vld [vmem:[#allocation10 + $0x4] sm:$0xf]
    %v481 = vld [vmem:[#allocation10 + $0x8] sm:$0xf]
    %v482 = vld [vmem:[#allocation10 + $0xc] sm:$0xf]
    %v483 = vld [vmem:[#allocation10 + $0x10] sm:$0xf]
    %v484 = vld [vmem:[#allocation10 + $0x14] sm:$0xf]
    %v485 = vld [vmem:[#allocation10 + $0x18] sm:$0xf]
    %v486 = vld [vmem:[#allocation10 + $0x1c] sm:$0xf]
    %v487 = vld [vmem:[#allocation10 + $0x20] sm:$0xf]
    %v488 = vld [vmem:[#allocation10 + $0x24] sm:$0xf]
    %v489 = vld [vmem:[#allocation10 + $0x28] sm:$0xf]
    %v490 = vld [vmem:[#allocation10 + $0x2c] sm:$0xf]
    %v491 = vld [vmem:[#allocation10 + $0x30] sm:$0xf]
    %v492 = vld [vmem:[#allocation10 + $0x34] sm:$0xf]
    %v493 = vld [vmem:[#allocation10 + $0x38] sm:$0xf]
    %v494 = vld [vmem:[#allocation10 + $0x3c] sm:$0xf]
    %v495 = vld [vmem:[%s6] sm:$0x1]
    %v497 = vlaneseq
    %v498 = vshrl.u32 %v497, 7
    %v499 = vsub.s32 0, %v498
    %v500 = vrot.slane %v495, %v499
    %v518 = vunpack.c.l.b16 %v479
    %v519 = vunpack.c.l.b16 %v480
    %v520 = vunpack.c.l.b16 %v481
    %v521 = vunpack.c.l.b16 %v482
    %v522 = vunpack.c.l.b16 %v483
    %v523 = vunpack.c.l.b16 %v484
    %v524 = vunpack.c.l.b16 %v485
    %v525 = vunpack.c.l.b16 %v486
    %v526 = vunpack.c.l.b16 %v487
    %v527 = vunpack.c.l.b16 %v488
    %v528 = vunpack.c.l.b16 %v489
    %v529 = vunpack.c.l.b16 %v490
    %v530 = vunpack.c.l.b16 %v491
    %v531 = vunpack.c.l.b16 %v492
    %v532 = vunpack.c.l.b16 %v493
    %v533 = vunpack.c.l.b16 %v494
    %v534 = vpack.c.b16 %v519, %v518
    %v535 = vpack.c.b16 %v521, %v520
    %v536 = vpack.c.b16 %v523, %v522
    %v537 = vpack.c.b16 %v525, %v524
    %v538 = vpack.c.b16 %v527, %v526
    %v539 = vpack.c.b16 %v529, %v528
    %v540 = vpack.c.b16 %v531, %v530
    %v541 = vpack.c.b16 %v533, %v532
    %550 = vmatprep.subr.bf16.mxu0 0
    %551 = vmatpush1.bf16.msra.mxu0 %v534
    %552 = vmatprep.subr.bf16.mxu0 0
    %553 = vmatpush1.bf16.msra.mxu0 %v535
    %554 = vmatprep.subr.bf16.mxu0 0
    %555 = vmatpush1.bf16.msra.mxu0 %v536
    %556 = vmatprep.subr.bf16.mxu0 0
    %557 = vmatpush1.bf16.msra.mxu0 %v537
    %558 = vmatprep.subr.bf16.mxu0 0
    %559 = vmatpush1.bf16.msra.mxu0 %v538
    %560 = vmatprep.subr.bf16.mxu0 0
    %561 = vmatpush1.bf16.msra.mxu0 %v539
    %562 = vmatprep.subr.bf16.mxu0 0
    %563 = vmatpush1.bf16.msra.mxu0 %v540
    %564 = vmatprep.subr.bf16.mxu0 0
    %565 = vmatpush1.bf16.msra.mxu0 %v541
    %566 = vmatprep.subr.bf16.mxu0 0
    %567 = vmatpush1.bf16.msra.mxu0 0
    %568 = vmatprep.subr.bf16.mxu0 0
    %569 = vmatpush1.bf16.msra.mxu0 0
    %570 = vmatprep.subr.bf16.mxu0 0
    %571 = vmatpush1.bf16.msra.mxu0 0
    %572 = vmatprep.subr.bf16.mxu0 0
    %573 = vmatpush1.bf16.msra.mxu0 0
    %574 = vmatprep.subr.bf16.mxu0 0
    %575 = vmatpush1.bf16.msra.mxu0 0
    %576 = vmatprep.subr.bf16.mxu0 0
    %577 = vmatpush1.bf16.msra.mxu0 0
    %578 = vmatprep.subr.bf16.mxu0 0
    %579 = vmatpush1.bf16.msra.mxu0 0
    %580 = vmatprep.subr.bf16.mxu0 0
    %581 = vmatpush1.bf16.msra.mxu0 0
    %582 = vmatprep.mubr.bf16.mxu0 0
    %583 = vmatmul.mubr.bf16.gmra.mrb[0].mxu0 %v478
    %v584 = vpop.f32.mrb[0].mxu0
    %v585 = vadd.f32 %v500, %v584
    %v586 = vpop.f32.mrb[0].mxu0
    %v587 = vpop.f32.mrb[0].mxu0
    %v588 = vadd.f32 %v500, %v587
    %v589 = vpop.f32.mrb[0].mxu0
    %590 = vdwg.mxu0
    %v591 = vlaneseq
    %v592 = vand.u32 %v591, 127
    %v593 = vmax.f32 %v585, -9.0
    %v594 = vmax.f32 %v588, -9.0
    %v595 = vmin.f32 %v593, 9.0
    %v596 = vmin.f32 %v594, 9.0
    %v597 = vmax.f32 %v585, -5.0
    %v598 = vmax.f32 %v588, -5.0
    %v599 = vmin.f32 %v597, 2.0
    %v600 = vmin.f32 %v598, 2.0
    %v601 = vmul.f32 %v599, 1.442695
    %v602 = vpow.pop %v601
    %v603 = vmul.f32 %v600, 1.442695
    %v604 = vpow.pop %v603
    %vm605 = vcmp.lt.s32.totalorder %v592, 4
    %v606 = vsel %vm605, %v595, %v602
    %v607 = vsel %vm605, %v596, %v604
    %608 = vst [vmem:[#allocation11] sm:$0xff] %v606
    %609 = vst [vmem:[#allocation11 + $0x8] sm:$0xff] %v607
    // Predicated region
    $region50: #{tpu_custom_call.1} parent=1 // pred_check
      _
    $region51: #{tpu_custom_call.1} parent=1 // pred_check_branch
      %611 = sbr.rel (0) target = $region53
    $region52: #{tpu_custom_call.1} parent=1 // pred_region
      %s613 = ssub.s32 256, 256
      %614 = vsyncadd [#allocation4], %s613
      %s615 = sshll.u32 [#allocation11], 4
      %s616 = int_to_ptr.vmem [resolvable:$true] %s615
      %621 = dma.vmem_to_hbm [thread:$0]  %s616, 256, %s7, [#allocation4], 128, 128, 8
    $region53: #{tpu_custom_call.1} parent=1 // pred_fallthru
      _
    // Predicated region
    $region54: #{tpu_custom_call.1} parent=1 // pred_check
      _
    $region55: #{tpu_custom_call.1} parent=1 // pred_check_branch
      %623 = sbr.rel (0) target = $region57
    $region56: #{tpu_custom_call.1} parent=1 // pred_region
      %624 = dma.done [#allocation4], 256
    $region57: #{tpu_custom_call.1} parent=1 // pred_fallthru
      _
    %625 = vsyncpa [#allocation3], 1
    %626 = vsyncpa [#allocation6], 1
    %627 = vsyncpa [#allocation9], 1
    %628 = vsyncpa [#allocation4], 1

</llo_original>
